<compile_context>
chip_gen: v6e
topology: v6e:2x2x1
jax: 0.10.0
libtpu: 0.0.40
codegen_flags: <defaults>
</compile_context>

<pallas_src>
import functools

import numpy as np
import jax
import jax.numpy as jnp
from jax.experimental import pallas as pl
from jax.experimental.pallas import tpu as pltpu

KSIZE = 7
PAD = 3  # 'same' padding for a size-7 kernel, stride 1


def make_gaussian_taps():
    """Replicates scipy.ndimage.gaussian_filter(delta_7x7x7, sigma=1).

    scipy uses a normalized 1-D Gaussian of radius int(truncate*sigma+0.5)=4 and
    mode='reflect', applied separably; filtering a delta at index 3 of a
    length-7 axis gives h[i] = g(|i-3|) plus a g(4) reflection term at both
    edges.  The 3-D conv weight is h (x) h (x) h, so the layer is exactly
    separable.
    """
    sigma = 1.0
    radius = int(4.0 * sigma + 0.5)
    t = np.arange(-radius, radius + 1, dtype=np.float64)
    g = np.exp(-0.5 * (t / sigma) ** 2)
    g = g / g.sum()
    h = np.array([g[radius + abs(i - 3)] for i in range(KSIZE)], dtype=np.float64)
    h[0] += g[radius + 4]   # x[-4] reflects onto the delta at index 3
    h[6] += g[radius + 4]   # x[10] reflects onto the delta at index 3
    k3 = np.einsum("i,j,k->ijk", h, h, h).astype(np.float32)  # the Conv3d weight
    return h, k3


def _band_right(taps, n):
    """(n, n) matrix B with B[v, w] = taps[v - w + PAD] inside the band, else 0.

    Right-multiplying a (rows, n) slab by B applies the 7-tap 'same'
    cross-correlation along the last axis, with the zero padding folded into
    the (truncated) band.
    """
    v = np.arange(n)[:, None]
    w = np.arange(n)[None, :]
    off = v - w + PAD
    mask = (off >= 0) & (off < KSIZE)
    t = np.asarray(taps, np.float64)
    return np.where(mask, t[np.clip(off, 0, KSIZE - 1)], 0.0).astype(np.float32)


def _gauss3d_kernel(x_ref, bw_ref, o_ref, hbuf, dbuf, *, D, H, W, taps):
    # x_ref: (1, D*H, W)   one batch; rows enumerate (d, h), lanes are w
    # bw_ref: (W, W)       banded W-axis taps (zero 'same' padding folded in)
    # o_ref: (1, D*H, W)
    # hbuf:  (D*H + 6, W)  VMEM scratch, row halo for the H pass
    # dbuf:  ((D+6)*H, W)  VMEM scratch, row halo for the D pass
    DH = D * H
    x = x_ref[0]

    # ---- W pass: one banded MXU matmul, M = D*H ----
    z = jnp.dot(x, bw_ref[...], preferred_element_type=jnp.float32)

    # ---- H pass: 7 shifted FMAs along the row axis.  Rows interleave (d, h),
    #      so taps whose source crosses an h boundary are masked per row. ----
    hbuf[pl.ds(0, PAD), :] = jnp.zeros((PAD, W), jnp.float32)
    hbuf[pl.ds(PAD + DH, PAD), :] = jnp.zeros((PAD, W), jnp.float32)
    hbuf[pl.ds(PAD, DH), :] = z
    row = jax.lax.broadcasted_iota(jnp.int32, (DH, W), 0)
    h_idx = (row & (H - 1)) if (H & (H - 1)) == 0 else (row % H)
    acc = None
    for k in range(KSIZE):
        term = hbuf[pl.ds(k, DH), :]
        lo, hi = max(0, PAD - k), min(H, H + PAD - k)
        if lo > 0 or hi < H:          # boundary taps only; center tap unmasked
            term = jnp.where((h_idx >= lo) & (h_idx < hi), term, 0.0)
        term = taps[k] * term
        acc = term if acc is None else acc + term

    # ---- D pass: 7 shifted FMAs at row offsets k*H (sublane-aligned when
    #      H % 8 == 0); the 3*H-row halos supply the zero 'same' padding. ----
    dbuf[pl.ds(0, PAD * H), :] = jnp.zeros((PAD * H, W), jnp.float32)
    dbuf[pl.ds((PAD + D) * H, PAD * H), :] = jnp.zeros((PAD * H, W), jnp.float32)
    dbuf[pl.ds(PAD * H, DH), :] = acc
    out = None
    for k in range(KSIZE):
        term = taps[k] * dbuf[pl.ds(k * H, DH), :]
        out = term if out is None else out + term

    o_ref[0] = out.astype(o_ref.dtype)


def _padded_buffer_bytes(shape, itemsize=4):
    """VMEM bytes for one buffer after (8, 128) minor-dim padding."""
    if len(shape) == 1:
        rows, cols, lead = 1, shape[0], 1
    else:
        rows, cols = shape[-2], shape[-1]
        lead = int(np.prod(shape[:-2])) if len(shape) > 2 else 1
    return lead * (-(-rows // 8) * 8) * (-(-cols // 128) * 128) * itemsize


def gaussian_layer_3d(x, taps):
    """Forward pass of GaussianLayer_3D.  x: (N, 1, D, H, W) float32."""
    N, C, D, H, W = x.shape
    assert C == 1, "GaussianLayer_3D uses a single channel"
    DH = D * H
    taps = [float(t) for t in np.asarray(taps, np.float64)]  # weak Python scalars
    bw = jnp.asarray(_band_right(taps, W))                    # (W, W), ~1 KiB

    x2 = x.reshape(N, DH, W)   # free reshape; no jnp.pad / extra HBM pass

    in_block = (1, DH, W)
    out_block = (1, DH, W)
    hbuf_shape = (DH + 2 * PAD, W)
    dbuf_shape = ((D + 2 * PAD) * H, W)

    # vmem_limit derived from the actual buffer budget (+ compiler headroom),
    # capped below v7x's 64 MiB physical VMEM (v5e/v6e have 128 MiB).
    budget = (2 * _padded_buffer_bytes(in_block)       # double-buffered input
              + 2 * _padded_buffer_bytes(out_block)    # double-buffered output
              + 2 * _padded_buffer_bytes((W, W))       # constant band matrix
              + _padded_buffer_bytes(hbuf_shape)
              + _padded_buffer_bytes(dbuf_shape))
    vmem_limit = int(min(48 * 2**20, budget + 8 * 2**20))

    out = pl.pallas_call(
        functools.partial(_gauss3d_kernel, D=D, H=H, W=W, taps=taps),
        out_shape=jax.ShapeDtypeStruct((N, DH, W), x.dtype),
        grid_spec=pltpu.PrefetchScalarGridSpec(
            num_scalar_prefetch=0,
            grid=(N,),                                 # one program per batch
            in_specs=[
                pl.BlockSpec(in_block, lambda n: (n, 0, 0)),
                pl.BlockSpec((W, W), lambda n: (0, 0)),  # grid-invariant constant
            ],
            out_specs=pl.BlockSpec(out_block, lambda n: (n, 0, 0)),
            scratch_shapes=[
                pltpu.VMEM(hbuf_shape, jnp.float32),
                pltpu.VMEM(dbuf_shape, jnp.float32),
            ],
        ),
        compiler_params=pltpu.CompilerParams(
            dimension_semantics=("parallel",),          # batch -> megacore cores
            vmem_limit_bytes=vmem_limit),
    )(x2, bw)

    return out.reshape(N, D, H, W)[:, None]   # back to NCDHW


if __name__ == "__main__":
    key = jax.random.PRNGKey(0)
    x = jax.random.normal(key, (2, 1, 16, 16, 16), dtype=jnp.float32)
    h_taps, k3 = make_gaussian_taps()

    y = gaussian_layer_3d(x, h_taps)
    y = jax.block_until_ready(y)
    assert y.shape == x.shape and y.dtype == x.dtype

    # Cross-check against XLA's conv with the module's full 7x7x7 weight.
    ref = jax.lax.conv_general_dilated(
        x, jnp.asarray(k3)[None, None],
        window_strides=(1, 1, 1), padding="SAME",
        dimension_numbers=("NCDHW", "OIDHW", "NCDHW"),
        precision=jax.lax.Precision.HIGHEST)
    np.testing.assert_allclose(np.asarray(y), np.asarray(ref),
                               atol=2e-3, rtol=2e-3)

    print("KERNEL_OK")
</pallas_src>

<mosaic_0001>
module attributes {stable_mosaic.version = 11 : i64} {
  func.func @_gauss3d_kernel(%arg0: i32, %arg1: memref<1x256x16xf32, #tpu.memory_space<vmem>>, %arg2: memref<16x16xf32, #tpu.memory_space<vmem>>, %arg3: memref<1x256x16xf32, #tpu.memory_space<vmem>>, %arg4: memref<262x16xf32, #tpu.memory_space<vmem>>, %arg5: memref<352x16xf32, #tpu.memory_space<vmem>>) attributes {dimension_semantics = [#tpu.dimension_semantics<parallel>], iteration_bounds = array<i64: 2>, scalar_prefetch = 0 : i64, scratch_operands = 2 : i64, tpu.core_type = #tpu.core_type<tc>, window_params = [{transform_indices = @transform_0, window_bounds = array<i64: 1, 256, 16>}, {pipeline_mode = #tpu.pipeline_mode<synchronous>, transform_indices = @transform_1, window_bounds = array<i64: 16, 16>}, {transform_indices = @transform_2, window_bounds = array<i64: 1, 256, 16>}]} {
    %c0 = arith.constant 0 : index
    %c0_0 = arith.constant 0 : index
    %c0_1 = arith.constant 0 : index
    %0 = vector.load %arg1[%c0, %c0_0, %c0_1] : memref<1x256x16xf32, #tpu.memory_space<vmem>>, vector<1x256x16xf32>
    %1 = vector.shape_cast %0 : vector<1x256x16xf32> to vector<256x16xf32>
    %c0_2 = arith.constant 0 : index
    %c0_3 = arith.constant 0 : index
    %2 = vector.load %arg2[%c0_2, %c0_3] : memref<16x16xf32, #tpu.memory_space<vmem>>, vector<16x16xf32>
    %cst = arith.constant dense<0.000000e+00> : vector<256x16xf32>
    %3 = tpu.matmul %1, %2, %cst {dimension_numbers = #tpu.dot_dimension_numbers<[1], [0], [0], [1], [0, 0, 1, 1], [], []>} : vector<256x16xf32>, vector<16x16xf32>, vector<256x16xf32> -> vector<256x16xf32>
    %cst_4 = arith.constant 0.000000e+00 : f32
    %4 = vector.broadcast %cst_4 : f32 to vector<3x16xf32>
    %c0_5 = arith.constant 0 : index
    %c0_6 = arith.constant 0 : index
    %5 = vector.load %arg4[%c0_5, %c0_6] : memref<262x16xf32, #tpu.memory_space<vmem>>, vector<3x16xf32>
    tpu.vector_store %arg4[%c0_5, %c0_6], %4 {strides = array<i32>} : memref<262x16xf32, #tpu.memory_space<vmem>>, vector<3x16xf32>,
    %cst_7 = arith.constant 0.000000e+00 : f32
    %6 = vector.broadcast %cst_7 : f32 to vector<3x16xf32>
    %c259 = arith.constant 259 : index
    %c0_8 = arith.constant 0 : index
    %7 = vector.load %arg4[%c259, %c0_8] : memref<262x16xf32, #tpu.memory_space<vmem>>, vector<3x16xf32>
    tpu.vector_store %arg4[%c259, %c0_8], %6 {strides = array<i32>} : memref<262x16xf32, #tpu.memory_space<vmem>>, vector<3x16xf32>,
    %c3 = arith.constant 3 : index
    %c0_9 = arith.constant 0 : index
    %8 = vector.load %arg4[%c3, %c0_9] : memref<262x16xf32, #tpu.memory_space<vmem>>, vector<256x16xf32>
    tpu.vector_store %arg4[%c3, %c0_9], %3 {strides = array<i32>} : memref<262x16xf32, #tpu.memory_space<vmem>>, vector<256x16xf32>,
    %9 = tpu.iota {dimensions = array<i32: 0>} : vector<256x16xi32>
    %c15_i32 = arith.constant 15 : i32
    %10 = vector.broadcast %c15_i32 : i32 to vector<256x16xi32>
    %11 = arith.andi %9, %10 : vector<256x16xi32>
    %c0_10 = arith.constant 0 : index
    %c0_11 = arith.constant 0 : index
    %12 = vector.load %arg4[%c0_10, %c0_11] : memref<262x16xf32, #tpu.memory_space<vmem>>, vector<256x16xf32>
    %c3_i32 = arith.constant 3 : i32
    %13 = vector.broadcast %c3_i32 : i32 to vector<256x16xi32>
    %14 = arith.cmpi sge, %11, %13 : vector<256x16xi32>
    %c16_i32 = arith.constant 16 : i32
    %15 = vector.broadcast %c16_i32 : i32 to vector<256x16xi32>
    %16 = arith.cmpi slt, %11, %15 : vector<256x16xi32>
    %17 = arith.andi %14, %16 : vector<256x16xi1>
    %cst_12 = arith.constant 0.000000e+00 : f32
    %18 = vector.broadcast %cst_12 : f32 to vector<256x16xf32>
    %19 = arith.select %17, %12, %18 : vector<256x16xi1>, vector<256x16xf32>
    %cst_13 = arith.constant 0.00456569204 : f32
    %20 = vector.broadcast %cst_13 : f32 to vector<256x16xf32>
    %21 = arith.mulf %20, %19 : vector<256x16xf32>
    %c1 = arith.constant 1 : index
    %c0_14 = arith.constant 0 : index
    %22 = vector.load %arg4[%c1, %c0_14] : memref<262x16xf32, #tpu.memory_space<vmem>>, vector<256x16xf32>
    %c2_i32 = arith.constant 2 : i32
    %23 = vector.broadcast %c2_i32 : i32 to vector<256x16xi32>
    %24 = arith.cmpi sge, %11, %23 : vector<256x16xi32>
    %c16_i32_15 = arith.constant 16 : i32
    %25 = vector.broadcast %c16_i32_15 : i32 to vector<256x16xi32>
    %26 = arith.cmpi slt, %11, %25 : vector<256x16xi32>
    %27 = arith.andi %24, %26 : vector<256x16xi1>
    %cst_16 = arith.constant 0.000000e+00 : f32
    %28 = vector.broadcast %cst_16 : f32 to vector<256x16xf32>
    %29 = arith.select %27, %22, %28 : vector<256x16xi1>, vector<256x16xf32>
    %cst_17 = arith.constant 0.0539911278 : f32
    %30 = vector.broadcast %cst_17 : f32 to vector<256x16xf32>
    %31 = arith.mulf %30, %29 : vector<256x16xf32>
    %32 = arith.addf %21, %31 : vector<256x16xf32>
    %c2 = arith.constant 2 : index
    %c0_18 = arith.constant 0 : index
    %33 = vector.load %arg4[%c2, %c0_18] : memref<262x16xf32, #tpu.memory_space<vmem>>, vector<256x16xf32>
    %c1_i32 = arith.constant 1 : i32
    %34 = vector.broadcast %c1_i32 : i32 to vector<256x16xi32>
    %35 = arith.cmpi sge, %11, %34 : vector<256x16xi32>
    %c16_i32_19 = arith.constant 16 : i32
    %36 = vector.broadcast %c16_i32_19 : i32 to vector<256x16xi32>
    %37 = arith.cmpi slt, %11, %36 : vector<256x16xi32>
    %38 = arith.andi %35, %37 : vector<256x16xi1>
    %cst_20 = arith.constant 0.000000e+00 : f32
    %39 = vector.broadcast %cst_20 : f32 to vector<256x16xf32>
    %40 = arith.select %38, %33, %39 : vector<256x16xi1>, vector<256x16xf32>
    %cst_21 = arith.constant 0.241971448 : f32
    %41 = vector.broadcast %cst_21 : f32 to vector<256x16xf32>
    %42 = arith.mulf %41, %40 : vector<256x16xf32>
    %43 = arith.addf %32, %42 : vector<256x16xf32>
    %c3_22 = arith.constant 3 : index
    %c0_23 = arith.constant 0 : index
    %44 = vector.load %arg4[%c3_22, %c0_23] : memref<262x16xf32, #tpu.memory_space<vmem>>, vector<256x16xf32>
    %cst_24 = arith.constant 0.398943484 : f32
    %45 = vector.broadcast %cst_24 : f32 to vector<256x16xf32>
    %46 = arith.mulf %45, %44 : vector<256x16xf32>
    %47 = arith.addf %43, %46 : vector<256x16xf32>
    %c4 = arith.constant 4 : index
    %c0_25 = arith.constant 0 : index
    %48 = vector.load %arg4[%c4, %c0_25] : memref<262x16xf32, #tpu.memory_space<vmem>>, vector<256x16xf32>
    %c0_i32 = arith.constant 0 : i32
    %49 = vector.broadcast %c0_i32 : i32 to vector<256x16xi32>
    %50 = arith.cmpi sge, %11, %49 : vector<256x16xi32>
    %c15_i32_26 = arith.constant 15 : i32
    %51 = vector.broadcast %c15_i32_26 : i32 to vector<256x16xi32>
    %52 = arith.cmpi slt, %11, %51 : vector<256x16xi32>
    %53 = arith.andi %50, %52 : vector<256x16xi1>
    %cst_27 = arith.constant 0.000000e+00 : f32
    %54 = vector.broadcast %cst_27 : f32 to vector<256x16xf32>
    %55 = arith.select %53, %48, %54 : vector<256x16xi1>, vector<256x16xf32>
    %cst_28 = arith.constant 0.241971448 : f32
    %56 = vector.broadcast %cst_28 : f32 to vector<256x16xf32>
    %57 = arith.mulf %56, %55 : vector<256x16xf32>
    %58 = arith.addf %47, %57 : vector<256x16xf32>
    %c5 = arith.constant 5 : index
    %c0_29 = arith.constant 0 : index
    %59 = vector.load %arg4[%c5, %c0_29] : memref<262x16xf32, #tpu.memory_space<vmem>>, vector<256x16xf32>
    %c0_i32_30 = arith.constant 0 : i32
    %60 = vector.broadcast %c0_i32_30 : i32 to vector<256x16xi32>
    %61 = arith.cmpi sge, %11, %60 : vector<256x16xi32>
    %c14_i32 = arith.constant 14 : i32
    %62 = vector.broadcast %c14_i32 : i32 to vector<256x16xi32>
    %63 = arith.cmpi slt, %11, %62 : vector<256x16xi32>
    %64 = arith.andi %61, %63 : vector<256x16xi1>
    %cst_31 = arith.constant 0.000000e+00 : f32
    %65 = vector.broadcast %cst_31 : f32 to vector<256x16xf32>
    %66 = arith.select %64, %59, %65 : vector<256x16xi1>, vector<256x16xf32>
    %cst_32 = arith.constant 0.0539911278 : f32
    %67 = vector.broadcast %cst_32 : f32 to vector<256x16xf32>
    %68 = arith.mulf %67, %66 : vector<256x16xf32>
    %69 = arith.addf %58, %68 : vector<256x16xf32>
    %c6 = arith.constant 6 : index
    %c0_33 = arith.constant 0 : index
    %70 = vector.load %arg4[%c6, %c0_33] : memref<262x16xf32, #tpu.memory_space<vmem>>, vector<256x16xf32>
    %c0_i32_34 = arith.constant 0 : i32
    %71 = vector.broadcast %c0_i32_34 : i32 to vector<256x16xi32>
    %72 = arith.cmpi sge, %11, %71 : vector<256x16xi32>
    %c13_i32 = arith.constant 13 : i32
    %73 = vector.broadcast %c13_i32 : i32 to vector<256x16xi32>
    %74 = arith.cmpi slt, %11, %73 : vector<256x16xi32>
    %75 = arith.andi %72, %74 : vector<256x16xi1>
    %cst_35 = arith.constant 0.000000e+00 : f32
    %76 = vector.broadcast %cst_35 : f32 to vector<256x16xf32>
    %77 = arith.select %75, %70, %76 : vector<256x16xi1>, vector<256x16xf32>
    %cst_36 = arith.constant 0.00456569204 : f32
    %78 = vector.broadcast %cst_36 : f32 to vector<256x16xf32>
    %79 = arith.mulf %78, %77 : vector<256x16xf32>
    %80 = arith.addf %69, %79 : vector<256x16xf32>
    %cst_37 = arith.constant 0.000000e+00 : f32
    %81 = vector.broadcast %cst_37 : f32 to vector<48x16xf32>
    %c0_38 = arith.constant 0 : index
    %c0_39 = arith.constant 0 : index
    %82 = vector.load %arg5[%c0_38, %c0_39] : memref<352x16xf32, #tpu.memory_space<vmem>>, vector<48x16xf32>
    tpu.vector_store %arg5[%c0_38, %c0_39], %81 {strides = array<i32>} : memref<352x16xf32, #tpu.memory_space<vmem>>, vector<48x16xf32>,
    %cst_40 = arith.constant 0.000000e+00 : f32
    %83 = vector.broadcast %cst_40 : f32 to vector<48x16xf32>
    %c304 = arith.constant 304 : index
    %c0_41 = arith.constant 0 : index
    %84 = vector.load %arg5[%c304, %c0_41] : memref<352x16xf32, #tpu.memory_space<vmem>>, vector<48x16xf32>
    tpu.vector_store %arg5[%c304, %c0_41], %83 {strides = array<i32>} : memref<352x16xf32, #tpu.memory_space<vmem>>, vector<48x16xf32>,
    %c48 = arith.constant 48 : index
    %c0_42 = arith.constant 0 : index
    %85 = vector.load %arg5[%c48, %c0_42] : memref<352x16xf32, #tpu.memory_space<vmem>>, vector<256x16xf32>
    tpu.vector_store %arg5[%c48, %c0_42], %80 {strides = array<i32>} : memref<352x16xf32, #tpu.memory_space<vmem>>, vector<256x16xf32>,
    %c0_43 = arith.constant 0 : index
    %c0_44 = arith.constant 0 : index
    %86 = vector.load %arg5[%c0_43, %c0_44] : memref<352x16xf32, #tpu.memory_space<vmem>>, vector<256x16xf32>
    %cst_45 = arith.constant 0.00456569204 : f32
    %87 = vector.broadcast %cst_45 : f32 to vector<256x16xf32>
    %88 = arith.mulf %87, %86 : vector<256x16xf32>
    %c16 = arith.constant 16 : index
    %c0_46 = arith.constant 0 : index
    %89 = vector.load %arg5[%c16, %c0_46] : memref<352x16xf32, #tpu.memory_space<vmem>>, vector<256x16xf32>
    %cst_47 = arith.constant 0.0539911278 : f32
    %90 = vector.broadcast %cst_47 : f32 to vector<256x16xf32>
    %91 = arith.mulf %90, %89 : vector<256x16xf32>
    %92 = arith.addf %88, %91 : vector<256x16xf32>
    %c32 = arith.constant 32 : index
    %c0_48 = arith.constant 0 : index
    %93 = vector.load %arg5[%c32, %c0_48] : memref<352x16xf32, #tpu.memory_space<vmem>>, vector<256x16xf32>
    %cst_49 = arith.constant 0.241971448 : f32
    %94 = vector.broadcast %cst_49 : f32 to vector<256x16xf32>
    %95 = arith.mulf %94, %93 : vector<256x16xf32>
    %96 = arith.addf %92, %95 : vector<256x16xf32>
    %c48_50 = arith.constant 48 : index
    %c0_51 = arith.constant 0 : index
    %97 = vector.load %arg5[%c48_50, %c0_51] : memref<352x16xf32, #tpu.memory_space<vmem>>, vector<256x16xf32>
    %cst_52 = arith.constant 0.398943484 : f32
    %98 = vector.broadcast %cst_52 : f32 to vector<256x16xf32>
    %99 = arith.mulf %98, %97 : vector<256x16xf32>
    %100 = arith.addf %96, %99 : vector<256x16xf32>
    %c64 = arith.constant 64 : index
    %c0_53 = arith.constant 0 : index
    %101 = vector.load %arg5[%c64, %c0_53] : memref<352x16xf32, #tpu.memory_space<vmem>>, vector<256x16xf32>
    %cst_54 = arith.constant 0.241971448 : f32
    %102 = vector.broadcast %cst_54 : f32 to vector<256x16xf32>
    %103 = arith.mulf %102, %101 : vector<256x16xf32>
    %104 = arith.addf %100, %103 : vector<256x16xf32>
    %c80 = arith.constant 80 : index
    %c0_55 = arith.constant 0 : index
    %105 = vector.load %arg5[%c80, %c0_55] : memref<352x16xf32, #tpu.memory_space<vmem>>, vector<256x16xf32>
    %cst_56 = arith.constant 0.0539911278 : f32
    %106 = vector.broadcast %cst_56 : f32 to vector<256x16xf32>
    %107 = arith.mulf %106, %105 : vector<256x16xf32>
    %108 = arith.addf %104, %107 : vector<256x16xf32>
    %c96 = arith.constant 96 : index
    %c0_57 = arith.constant 0 : index
    %109 = vector.load %arg5[%c96, %c0_57] : memref<352x16xf32, #tpu.memory_space<vmem>>, vector<256x16xf32>
    %cst_58 = arith.constant 0.00456569204 : f32
    %110 = vector.broadcast %cst_58 : f32 to vector<256x16xf32>
    %111 = arith.mulf %110, %109 : vector<256x16xf32>
    %112 = arith.addf %108, %111 : vector<256x16xf32>
    %c0_59 = arith.constant 0 : index
    %c0_60 = arith.constant 0 : index
    %c0_61 = arith.constant 0 : index
    %113 = vector.load %arg3[%c0_59, %c0_60, %c0_61] : memref<1x256x16xf32, #tpu.memory_space<vmem>>, vector<1x256x16xf32>
    %114 = vector.shape_cast %113 : vector<1x256x16xf32> to vector<256x16xf32>
    %115 = vector.shape_cast %112 : vector<256x16xf32> to vector<1x256x16xf32>
    tpu.vector_store %arg3[%c0_59, %c0_60, %c0_61], %115 {strides = array<i32>} : memref<1x256x16xf32, #tpu.memory_space<vmem>>, vector<1x256x16xf32>,
    return
  }
  func.func @transform_0(%arg0: i32) -> (i32, i32, i32) {
    %c0_i32 = arith.constant 0 : i32
    %c0_i32_0 = arith.constant 0 : i32
    %c0_i32_1 = arith.constant 0 : i32
    return %arg0, %c0_i32, %c0_i32_0 : i32, i32, i32
  }
  func.func @transform_1(%arg0: i32) -> (i32, i32) {
    %c0_i32 = arith.constant 0 : i32
    %c0_i32_0 = arith.constant 0 : i32
    %c0_i32_1 = arith.constant 0 : i32
    return %c0_i32, %c0_i32_0 : i32, i32
  }
  func.func @transform_2(%arg0: i32) -> (i32, i32, i32) {
    %c0_i32 = arith.constant 0 : i32
    %c0_i32_0 = arith.constant 0 : i32
    %c0_i32_1 = arith.constant 0 : i32
    return %arg0, %c0_i32, %c0_i32_0 : i32, i32, i32
  }
}

</mosaic_0001>

<llo_original>
// kernel: tpu_custom_call.1
$region0: #{tpu_custom_call.1}
  #allocation0 [shape = 'u32[]', space=smem, size = 0x4, offset = 0x4, fixed_abs, tag = 'smem constant byte address 0x4 - core index']
  #allocation1 [shape = 'u32[144,128]{1,0:T(1,128)}', space=vmem, size = 0x12000, scoped, tag = 'internal scratch']
  #allocation2 [shape = 'f32[262,16]{1,0:T(8,128)}', space=vmem, size = 0x21000, scoped, tag = 'scratch operand']
  #allocation3 [shape = 'f32[352,16]{1,0:T(8,128)}', space=vmem, size = 0x2c000, scoped, tag = 'scratch operand']
  %s0 = inlined_call_operand.vmem [shape: f32[2,256,16], index: 0, kind: input, shape index: {}]
  %s1 = inlined_call_operand.vmem [shape: f32[16,16], index: 1, kind: input, shape index: {}]
  %s2 = inlined_call_operand.vmem [shape: f32[2,256,16], index: 2, kind: output, shape index: {}]
  %s3 = sld [smem:[#allocation0]]
  $region41: #{tpu_custom_call.1} parent=0
    _
  %s5 = ssub.s32 1, %s3
  %s6 = scalar_select 0, %s5, %s3
  loop: start=0, step=1, limit=4
  $region2: #{tpu_custom_call.1} parent=0 // loop_pre_header
    _
  $region3: #{tpu_custom_call.1} parent=0 // loop_header
    %s8 = sphi 0, %s12
    %p9 = scmp.ge.s32.totalorder %s8, 4
    %s18 = sphi 0, %s20
    %s21 = sphi 0, %s18
    %s22 = sphi 0, %s21
    %s38 = sphi 0, %s22
    %s42 = sphi 0, %s42
    %s44 = sphi 0, %s42
    %s45 = sphi 0, %s44
    %s59 = sphi 0, %s45
    %s65 = sphi 0, %s67
    %s68 = sphi 0, %s65
    %s69 = sphi 0, %s68
    %s85 = sphi 0, %s69
  $region4: #{tpu_custom_call.1} parent=0 // loop_header_branch
    %11 = sbr.rel (%p9) target = $region8
  $region5: #{tpu_custom_call.1} parent=0 // loop_body
    %s13 = ssub.s32 %s8, 1
    %s14 = ssub.s32 %s8, 2
    %s15 = sadd.s32 %s8, 1
    %s16 = ssub.s32 %s8, %s15
    %p17 = scmp.eq.s32.totalorder %s16, 0
    %s19 = sadd.s32 %s18, 1
    %s20 = scalar_select %p17, %s18, %s19
    %p23 = pneg %p17
    %p24 = scmp.eq.s32.totalorder %s8, 1
    %p25 = por %p23, %p24
    %p26 = scmp.ne.s32.totalorder %s18, %s21
    %p27 = scmp.eq.s32.totalorder %s8, 0
    %p28 = por %p26, %p27
    %p29 = scmp.ne.s32.totalorder %s18, %s21
    %p30 = scmp.eq.s32.totalorder %s13, 1
    %p31 = por %p29, %p30
    %p32 = scmp.ne.s32.totalorder %s21, %s22
    %p33 = scmp.eq.s32.totalorder %s13, 0
    %p34 = por %p32, %p33
    %p35 = scmp.ne.s32.totalorder %s21, %s22
    %p36 = scmp.eq.s32.totalorder %s14, 1
    %p37 = por %p35, %p36
    %p39 = scmp.ne.s32.totalorder %s22, %s38
    %p40 = scmp.eq.s32.totalorder %s14, 0
    %p41 = por %p39, %p40
    %s43 = sadd.s32 %s42, 1
    %p46 = scmp.eq.s32.totalorder %s8, 1
    %p47 = scmp.ne.s32.totalorder %s42, %s44
    %p48 = scmp.eq.s32.totalorder %s8, 0
    %p49 = por %p47, %p48
    %p50 = scmp.ne.s32.totalorder %s42, %s44
    %p51 = scmp.eq.s32.totalorder %s13, 1
    %p52 = por %p50, %p51
    %p53 = scmp.ne.s32.totalorder %s44, %s45
    %p54 = scmp.eq.s32.totalorder %s13, 0
    %p55 = por %p53, %p54
    %p56 = scmp.ne.s32.totalorder %s44, %s45
    %p57 = scmp.eq.s32.totalorder %s14, 1
    %p58 = por %p56, %p57
    %p60 = scmp.ne.s32.totalorder %s45, %s59
    %p61 = scmp.eq.s32.totalorder %s14, 0
    %p62 = por %p60, %p61
    %s63 = ssub.s32 %s8, %s15
    %p64 = scmp.eq.s32.totalorder %s63, 0
    %s66 = sadd.s32 %s65, 1
    %s67 = scalar_select %p64, %s65, %s66
    %p70 = pneg %p64
    %p71 = scmp.eq.s32.totalorder %s8, 1
    %p72 = por %p70, %p71
    %p73 = scmp.ne.s32.totalorder %s65, %s68
    %p74 = scmp.eq.s32.totalorder %s8, 0
    %p75 = por %p73, %p74
    %p76 = scmp.ne.s32.totalorder %s65, %s68
    %p77 = scmp.eq.s32.totalorder %s13, 1
    %p78 = por %p76, %p77
    %p79 = scmp.ne.s32.totalorder %s68, %s69
    %p80 = scmp.eq.s32.totalorder %s13, 0
    %p81 = por %p79, %p80
    %p82 = scmp.ne.s32.totalorder %s68, %s69
    %p83 = scmp.eq.s32.totalorder %s14, 1
    %p84 = por %p82, %p83
    %p86 = scmp.ne.s32.totalorder %s69, %s85
    %p87 = scmp.eq.s32.totalorder %s14, 0
    %p88 = por %p86, %p87
    %p89 = scmp.le.s32.totalorder 1, %s8
    %p90 = scmp.lt.s32.totalorder %s8, 3
    %p91 = pnand %p89, %p90
    %p92 = pneg %p91
    // Predicated region
    $region9: #{tpu_custom_call.1} parent=5 // pred_check
      _
    $region10: #{tpu_custom_call.1} parent=5 // pred_check_branch
      %94 = sbr.rel (%p91) target = $region12
    $region11: #{tpu_custom_call.1} parent=5 // pred_region
      %s95 = ssub.s32 %s8, 1
      // Predicated region
      $region13: #{tpu_custom_call.1} parent=11 // pred_check
        %p96 = pneg %p55
      $region14: #{tpu_custom_call.1} parent=11 // pred_check_branch
        %98 = sbr.rel (%p96) target = $region16
      $region15: #{tpu_custom_call.1} parent=11 // pred_region
        _
      $region16: #{tpu_custom_call.1} parent=11 // pred_fallthru
        _
    $region12: #{tpu_custom_call.1} parent=5 // pred_fallthru
      _
    %p99 = scmp.lt.s32.totalorder %s8, 2
    // Predicated region
    $region17: #{tpu_custom_call.1} parent=5 // pred_check
      %p100 = pneg %p99
    $region18: #{tpu_custom_call.1} parent=5 // pred_check_branch
      %102 = sbr.rel (%p100) target = $region20
    $region19: #{tpu_custom_call.1} parent=5 // pred_region
      // Predicated region
      $region21: #{tpu_custom_call.1} parent=19 // pred_check
        %p103 = pneg %p28
      $region22: #{tpu_custom_call.1} parent=19 // pred_check_branch
        %105 = sbr.rel (%p103) target = $region24
      $region23: #{tpu_custom_call.1} parent=19 // pred_region
        %p106 = scmp.lt.s32.totalorder %s8, 1
        %s107 = scalar_select %p106, %s8, 1
        %s108 = smul.addr %s107, 32
        %s109 = smul.addr %s108, 8
        %s110 = scalar_lea.vmem %s0, %s109
      $region24: #{tpu_custom_call.1} parent=19 // pred_fallthru
        _
    $region20: #{tpu_custom_call.1} parent=5 // pred_fallthru
      _
    %p111 = scmp.le.s32.totalorder 1, %s8
    %p112 = scmp.lt.s32.totalorder %s8, 3
    %p113 = pnand %p111, %p112
    %p114 = pneg %p113
    // Predicated region
    $region25: #{tpu_custom_call.1} parent=5 // pred_check
      _
    $region26: #{tpu_custom_call.1} parent=5 // pred_check_branch
      %116 = sbr.rel (%p113) target = $region28
    $region27: #{tpu_custom_call.1} parent=5 // pred_region
      %s117 = ssub.s32 %s8, 1
      %p118 = scmp.lt.s32.totalorder %s13, 1
      %s119 = scalar_select %p118, %s13, 1
      %s120 = smul.addr %s119, 32
      %s121 = smul.addr %s120, 8
      %s122 = scalar_lea.vmem %s0, %s121
      %p123 = pneg %p34
      %p124 = pneg %p31
      %p125 = pneg %p55
      %p126 = pneg %p52
      %p127 = pneg %p81
      %p128 = pneg %p78
      %p129 = scmp.lt.s32.totalorder %s13, 1
      %s130 = scalar_select %p129, %s13, 1
      %s131 = smul.addr %s130, 32
      %s132 = smul.addr %s131, 8
      %s133 = scalar_lea.vmem %s2, %s132
      %p134 = scmp.lt.s32.totalorder %s13, 1
      %s135 = scalar_select %p134, %s13, 1
      %s136 = smul.addr %s135, 32
      %s137 = smul.addr %s136, 8
      %s138 = scalar_lea.vmem %s0, %s137
      %p139 = scmp.lt.s32.totalorder %s13, 1
      %s140 = scalar_select %p139, %s13, 1
      %s141 = smul.addr %s140, 32
      %s142 = smul.addr %s141, 8
      %s143 = scalar_lea.vmem %s2, %s142
      %v144 = vld [vmem:[%s138] sm:$0xff]
      %v145 = vld [vmem:[%s138 + $0x8] sm:$0xff]
      %v146 = vld [vmem:[%s138 + $0x10] sm:$0xff]
      %v147 = vld [vmem:[%s138 + $0x18] sm:$0xff]
      %v148 = vld [vmem:[%s138 + $0x20] sm:$0xff]
      %v149 = vld [vmem:[%s138 + $0x28] sm:$0xff]
      %v150 = vld [vmem:[%s138 + $0x30] sm:$0xff]
      %v151 = vld [vmem:[%s138 + $0x38] sm:$0xff]
      %v152 = vld [vmem:[%s138 + $0x40] sm:$0xff]
      %v153 = vld [vmem:[%s138 + $0x48] sm:$0xff]
      %v154 = vld [vmem:[%s138 + $0x50] sm:$0xff]
      %v155 = vld [vmem:[%s138 + $0x58] sm:$0xff]
      %v156 = vld [vmem:[%s138 + $0x60] sm:$0xff]
      %v157 = vld [vmem:[%s138 + $0x68] sm:$0xff]
      %v158 = vld [vmem:[%s138 + $0x70] sm:$0xff]
      %v159 = vld [vmem:[%s138 + $0x78] sm:$0xff]
      %v160 = vld [vmem:[%s138 + $0x80] sm:$0xff]
      %v161 = vld [vmem:[%s138 + $0x88] sm:$0xff]
      %v162 = vld [vmem:[%s138 + $0x90] sm:$0xff]
      %v163 = vld [vmem:[%s138 + $0x98] sm:$0xff]
      %v164 = vld [vmem:[%s138 + $0xa0] sm:$0xff]
      %v165 = vld [vmem:[%s138 + $0xa8] sm:$0xff]
      %v166 = vld [vmem:[%s138 + $0xb0] sm:$0xff]
      %v167 = vld [vmem:[%s138 + $0xb8] sm:$0xff]
      %v168 = vld [vmem:[%s138 + $0xc0] sm:$0xff]
      %v169 = vld [vmem:[%s138 + $0xc8] sm:$0xff]
      %v170 = vld [vmem:[%s138 + $0xd0] sm:$0xff]
      %v171 = vld [vmem:[%s138 + $0xd8] sm:$0xff]
      %v172 = vld [vmem:[%s138 + $0xe0] sm:$0xff]
      %v173 = vld [vmem:[%s138 + $0xe8] sm:$0xff]
      %v174 = vld [vmem:[%s138 + $0xf0] sm:$0xff]
      %v175 = vld [vmem:[%s138 + $0xf8] sm:$0xff]
      %v176 = vld [vmem:[%s1] sm:$0xff]
      %v177 = vld [vmem:[%s1 + $0x8] sm:$0xff]
      %vm178 = vcmask 130048
      %v180 = vsel %vm178, %v144, 0
      %v183 = vsel %vm178, %v145, 0
      %v186 = vsel %vm178, %v146, 0
      %v189 = vsel %vm178, %v147, 0
      %v192 = vsel %vm178, %v148, 0
      %v195 = vsel %vm178, %v149, 0
      %v198 = vsel %vm178, %v150, 0
      %v201 = vsel %vm178, %v151, 0
      %v204 = vsel %vm178, %v152, 0
      %v207 = vsel %vm178, %v153, 0
      %v210 = vsel %vm178, %v154, 0
      %v213 = vsel %vm178, %v155, 0
      %v216 = vsel %vm178, %v156, 0
      %v219 = vsel %vm178, %v157, 0
      %v222 = vsel %vm178, %v158, 0
      %v225 = vsel %vm178, %v159, 0
      %v228 = vsel %vm178, %v160, 0
      %v231 = vsel %vm178, %v161, 0
      %v234 = vsel %vm178, %v162, 0
      %v237 = vsel %vm178, %v163, 0
      %v240 = vsel %vm178, %v164, 0
      %v243 = vsel %vm178, %v165, 0
      %v246 = vsel %vm178, %v166, 0
      %v249 = vsel %vm178, %v167, 0
      %v252 = vsel %vm178, %v168, 0
      %v255 = vsel %vm178, %v169, 0
      %v258 = vsel %vm178, %v170, 0
      %v261 = vsel %vm178, %v171, 0
      %v264 = vsel %vm178, %v172, 0
      %v267 = vsel %vm178, %v173, 0
      %v270 = vsel %vm178, %v174, 0
      %v273 = vsel %vm178, %v175, 0
      %275 = vmatprep.subr.mxu0 0.0
      %276 = vmatpush1.msra.mxu0 0.0
      %277 = vmatprep.subr.mxu0 0.0
      %278 = vmatpush1.msra.mxu0 0.0
      %279 = vmatprep.subr.mxu0 0.0
      %280 = vmatpush1.msra.mxu0 0.0
      %281 = vmatprep.subr.mxu0 0.0
      %282 = vmatpush1.msra.mxu0 0.0
      %283 = vmatprep.subr.mxu0 0.0
      %284 = vmatpush1.msra.mxu0 0.0
      %285 = vmatprep.subr.mxu0 0.0
      %286 = vmatpush1.msra.mxu0 0.0
      %287 = vmatprep.subr.mxu0 0.0
      %288 = vmatpush1.msra.mxu0 0.0
      %289 = vmatprep.subr.mxu0 0.0
      %290 = vmatpush1.msra.mxu0 0.0
      %291 = vmatprep.subr.mxu0 0.0
      %292 = vmatpush1.msra.mxu0 0.0
      %293 = vmatprep.subr.mxu0 0.0
      %294 = vmatpush1.msra.mxu0 0.0
      %295 = vmatprep.subr.mxu0 0.0
      %296 = vmatpush1.msra.mxu0 0.0
      %297 = vmatprep.subr.mxu0 0.0
      %298 = vmatpush1.msra.mxu0 0.0
      %299 = vmatprep.subr.mxu0 0.0
      %300 = vmatpush1.msra.mxu0 0.0
      %301 = vmatprep.subr.mxu0 0.0
      %302 = vmatpush1.msra.mxu0 0.0
      %303 = vmatprep.subr.mxu0 0.0
      %304 = vmatpush1.msra.mxu0 %v177
      %305 = vmatprep.subr.mxu0 0.0
      %306 = vmatpush1.msra.mxu0 %v176
      %307 = vmatprep.subr.mxu0 0.0
      %308 = vmatpush2.msra.mxu0 0.0
      %309 = vmatprep.subr.mxu0 0.0
      %310 = vmatpush2.msra.mxu0 0.0
      %311 = vmatprep.subr.mxu0 0.0
      %312 = vmatpush2.msra.mxu0 0.0
      %313 = vmatprep.subr.mxu0 0.0
      %314 = vmatpush2.msra.mxu0 0.0
      %315 = vmatprep.subr.mxu0 0.0
      %316 = vmatpush2.msra.mxu0 0.0
      %317 = vmatprep.subr.mxu0 0.0
      %318 = vmatpush2.msra.mxu0 0.0
      %319 = vmatprep.subr.mxu0 0.0
      %320 = vmatpush2.msra.mxu0 0.0
      %321 = vmatprep.subr.mxu0 0.0
      %322 = vmatpush2.msra.mxu0 0.0
      %323 = vmatprep.subr.mxu0 0.0
      %324 = vmatpush2.msra.mxu0 0.0
      %325 = vmatprep.subr.mxu0 0.0
      %326 = vmatpush2.msra.mxu0 0.0
      %327 = vmatprep.subr.mxu0 0.0
      %328 = vmatpush2.msra.mxu0 0.0
      %329 = vmatprep.subr.mxu0 0.0
      %330 = vmatpush2.msra.mxu0 0.0
      %331 = vmatprep.subr.mxu0 0.0
      %332 = vmatpush2.msra.mxu0 0.0
      %333 = vmatprep.subr.mxu0 0.0
      %334 = vmatpush2.msra.mxu0 0.0
      %335 = vmatprep.subr.mxu0 0.0
      %336 = vmatpush2.msra.mxu0 0.0
      %337 = vmatprep.subr.mxu0 0.0
      %338 = vmatpush2.msra.mxu0 0.0
      %339 = vmatprep.mubr.f32.mxu0 0.0
      %340 = vmatmul.mubr.f32.gmra.mxu0 %v180
      %v341 = vpop.f32.mrf.mxu0
      %v342 = vadd.f32 0.0, %v341
      %v343 = vpop.f32.mrf.mxu0
      %344 = vmatprep.mubr.f32.mxu0 0.0
      %345 = vmatmul.mubr.f32.gmra.mxu0 %v183
      %v346 = vpop.f32.mrf.mxu0
      %v347 = vadd.f32 0.0, %v346
      %v348 = vpop.f32.mrf.mxu0
      %349 = vmatprep.mubr.f32.mxu0 0.0
      %350 = vmatmul.mubr.f32.gmra.mxu0 %v186
      %v351 = vpop.f32.mrf.mxu0
      %v352 = vadd.f32 0.0, %v351
      %v353 = vpop.f32.mrf.mxu0
      %354 = vmatprep.mubr.f32.mxu0 0.0
      %355 = vmatmul.mubr.f32.gmra.mxu0 %v189
      %v356 = vpop.f32.mrf.mxu0
      %v357 = vadd.f32 0.0, %v356
      %v358 = vpop.f32.mrf.mxu0
      %359 = vmatprep.mubr.f32.mxu0 0.0
      %360 = vmatmul.mubr.f32.gmra.mxu0 %v192
      %v361 = vpop.f32.mrf.mxu0
      %v362 = vadd.f32 0.0, %v361
      %v363 = vpop.f32.mrf.mxu0
      %364 = vmatprep.mubr.f32.mxu0 0.0
      %365 = vmatmul.mubr.f32.gmra.mxu0 %v195
      %v366 = vpop.f32.mrf.mxu0
      %v367 = vadd.f32 0.0, %v366
      %v368 = vpop.f32.mrf.mxu0
      %369 = vmatprep.mubr.f32.mxu0 0.0
      %370 = vmatmul.mubr.f32.gmra.mxu0 %v198
      %v371 = vpop.f32.mrf.mxu0
      %v372 = vadd.f32 0.0, %v371
      %v373 = vpop.f32.mrf.mxu0
      %374 = vmatprep.mubr.f32.mxu0 0.0
      %375 = vmatmul.mubr.f32.gmra.mxu0 %v201
      %v376 = vpop.f32.mrf.mxu0
      %v377 = vadd.f32 0.0, %v376
      %v378 = vpop.f32.mrf.mxu0
      %379 = vmatprep.mubr.f32.mxu0 0.0
      %380 = vmatmul.mubr.f32.gmra.mxu0 %v204
      %v381 = vpop.f32.mrf.mxu0
      %v382 = vadd.f32 0.0, %v381
      %v383 = vpop.f32.mrf.mxu0
      %384 = vmatprep.mubr.f32.mxu0 0.0
      %385 = vmatmul.mubr.f32.gmra.mxu0 %v207
      %v386 = vpop.f32.mrf.mxu0
      %v387 = vadd.f32 0.0, %v386
      %v388 = vpop.f32.mrf.mxu0
      %389 = vmatprep.mubr.f32.mxu0 0.0
      %390 = vmatmul.mubr.f32.gmra.mxu0 %v210
      %v391 = vpop.f32.mrf.mxu0
      %v392 = vadd.f32 0.0, %v391
      %v393 = vpop.f32.mrf.mxu0
      %394 = vmatprep.mubr.f32.mxu0 0.0
      %395 = vmatmul.mubr.f32.gmra.mxu0 %v213
      %v396 = vpop.f32.mrf.mxu0
      %v397 = vadd.f32 0.0, %v396
      %v398 = vpop.f32.mrf.mxu0
      %399 = vmatprep.mubr.f32.mxu0 0.0
      %400 = vmatmul.mubr.f32.gmra.mxu0 %v216
      %v401 = vpop.f32.mrf.mxu0
      %v402 = vadd.f32 0.0, %v401
      %v403 = vpop.f32.mrf.mxu0
      %404 = vmatprep.mubr.f32.mxu0 0.0
      %405 = vmatmul.mubr.f32.gmra.mxu0 %v219
      %v406 = vpop.f32.mrf.mxu0
      %v407 = vadd.f32 0.0, %v406
      %v408 = vpop.f32.mrf.mxu0
      %409 = vmatprep.mubr.f32.mxu0 0.0
      %410 = vmatmul.mubr.f32.gmra.mxu0 %v222
      %v411 = vpop.f32.mrf.mxu0
      %v412 = vadd.f32 0.0, %v411
      %v413 = vpop.f32.mrf.mxu0
      %414 = vmatprep.mubr.f32.mxu0 0.0
      %415 = vmatmul.mubr.f32.gmra.mxu0 %v225
      %v416 = vpop.f32.mrf.mxu0
      %v417 = vadd.f32 0.0, %v416
      %v418 = vpop.f32.mrf.mxu0
      %419 = vmatprep.mubr.f32.mxu0 0.0
      %420 = vmatmul.mubr.f32.gmra.mxu0 %v228
      %v421 = vpop.f32.mrf.mxu0
      %v422 = vadd.f32 0.0, %v421
      %v423 = vpop.f32.mrf.mxu0
      %424 = vmatprep.mubr.f32.mxu0 0.0
      %425 = vmatmul.mubr.f32.gmra.mxu0 %v231
      %v426 = vpop.f32.mrf.mxu0
      %v427 = vadd.f32 0.0, %v426
      %v428 = vpop.f32.mrf.mxu0
      %429 = vmatprep.mubr.f32.mxu0 0.0
      %430 = vmatmul.mubr.f32.gmra.mxu0 %v234
      %v431 = vpop.f32.mrf.mxu0
      %v432 = vadd.f32 0.0, %v431
      %v433 = vpop.f32.mrf.mxu0
      %434 = vmatprep.mubr.f32.mxu0 0.0
      %435 = vmatmul.mubr.f32.gmra.mxu0 %v237
      %v436 = vpop.f32.mrf.mxu0
      %v437 = vadd.f32 0.0, %v436
      %v438 = vpop.f32.mrf.mxu0
      %439 = vmatprep.mubr.f32.mxu0 0.0
      %440 = vmatmul.mubr.f32.gmra.mxu0 %v240
      %v441 = vpop.f32.mrf.mxu0
      %v442 = vadd.f32 0.0, %v441
      %v443 = vpop.f32.mrf.mxu0
      %444 = vmatprep.mubr.f32.mxu0 0.0
      %445 = vmatmul.mubr.f32.gmra.mxu0 %v243
      %v446 = vpop.f32.mrf.mxu0
      %v447 = vadd.f32 0.0, %v446
      %v448 = vpop.f32.mrf.mxu0
      %449 = vmatprep.mubr.f32.mxu0 0.0
      %450 = vmatmul.mubr.f32.gmra.mxu0 %v246
      %v451 = vpop.f32.mrf.mxu0
      %v452 = vadd.f32 0.0, %v451
      %v453 = vpop.f32.mrf.mxu0
      %454 = vmatprep.mubr.f32.mxu0 0.0
      %455 = vmatmul.mubr.f32.gmra.mxu0 %v249
      %v456 = vpop.f32.mrf.mxu0
      %v457 = vadd.f32 0.0, %v456
      %v458 = vpop.f32.mrf.mxu0
      %459 = vmatprep.mubr.f32.mxu0 0.0
      %460 = vmatmul.mubr.f32.gmra.mxu0 %v252
      %v461 = vpop.f32.mrf.mxu0
      %v462 = vadd.f32 0.0, %v461
      %v463 = vpop.f32.mrf.mxu0
      %464 = vmatprep.mubr.f32.mxu0 0.0
      %465 = vmatmul.mubr.f32.gmra.mxu0 %v255
      %v466 = vpop.f32.mrf.mxu0
      %v467 = vadd.f32 0.0, %v466
      %v468 = vpop.f32.mrf.mxu0
      %469 = vmatprep.mubr.f32.mxu0 0.0
      %470 = vmatmul.mubr.f32.gmra.mxu0 %v258
      %v471 = vpop.f32.mrf.mxu0
      %v472 = vadd.f32 0.0, %v471
      %v473 = vpop.f32.mrf.mxu0
      %474 = vmatprep.mubr.f32.mxu0 0.0
      %475 = vmatmul.mubr.f32.gmra.mxu0 %v261
      %v476 = vpop.f32.mrf.mxu0
      %v477 = vadd.f32 0.0, %v476
      %v478 = vpop.f32.mrf.mxu0
      %479 = vmatprep.mubr.f32.mxu0 0.0
      %480 = vmatmul.mubr.f32.gmra.mxu0 %v264
      %v481 = vpop.f32.mrf.mxu0
      %v482 = vadd.f32 0.0, %v481
      %v483 = vpop.f32.mrf.mxu0
      %484 = vmatprep.mubr.f32.mxu0 0.0
      %485 = vmatmul.mubr.f32.gmra.mxu0 %v267
      %v486 = vpop.f32.mrf.mxu0
      %v487 = vadd.f32 0.0, %v486
      %v488 = vpop.f32.mrf.mxu0
      %489 = vmatprep.mubr.f32.mxu0 0.0
      %490 = vmatmul.mubr.f32.gmra.mxu0 %v270
      %v491 = vpop.f32.mrf.mxu0
      %v492 = vadd.f32 0.0, %v491
      %v493 = vpop.f32.mrf.mxu0
      %494 = vmatprep.mubr.f32.mxu0 0.0
      %495 = vmatmul.mubr.f32.gmra.mxu0 %v273
      %v496 = vpop.f32.mrf.mxu0
      %v497 = vadd.f32 0.0, %v496
      %v498 = vpop.f32.mrf.mxu0
      %499 = vdwg.mxu0
      %vm500 = vcmask 124928
      %501 = vst.msk [vmem:[#allocation2] sm:$0x7] %vm500, 0.0
      %502 = vst.msk [vmem:[#allocation2 + $0x103] sm:$0x7] %vm500, 0.0
      %503 = vst.msk [vmem:[#allocation2 + $0x3] sm:$0xff] %vm178, %v342
      %504 = vst.msk [vmem:[#allocation2 + $0xb] sm:$0xff] %vm178, %v347
      %505 = vst.msk [vmem:[#allocation2 + $0x13] sm:$0xff] %vm178, %v352
      %506 = vst.msk [vmem:[#allocation2 + $0x1b] sm:$0xff] %vm178, %v357
      %507 = vst.msk [vmem:[#allocation2 + $0x23] sm:$0xff] %vm178, %v362
      %508 = vst.msk [vmem:[#allocation2 + $0x2b] sm:$0xff] %vm178, %v367
      %509 = vst.msk [vmem:[#allocation2 + $0x33] sm:$0xff] %vm178, %v372
      %510 = vst.msk [vmem:[#allocation2 + $0x3b] sm:$0xff] %vm178, %v377
      %511 = vst.msk [vmem:[#allocation2 + $0x43] sm:$0xff] %vm178, %v382
      %512 = vst.msk [vmem:[#allocation2 + $0x4b] sm:$0xff] %vm178, %v387
      %513 = vst.msk [vmem:[#allocation2 + $0x53] sm:$0xff] %vm178, %v392
      %514 = vst.msk [vmem:[#allocation2 + $0x5b] sm:$0xff] %vm178, %v397
      %515 = vst.msk [vmem:[#allocation2 + $0x63] sm:$0xff] %vm178, %v402
      %516 = vst.msk [vmem:[#allocation2 + $0x6b] sm:$0xff] %vm178, %v407
      %517 = vst.msk [vmem:[#allocation2 + $0x73] sm:$0xff] %vm178, %v412
      %518 = vst.msk [vmem:[#allocation2 + $0x7b] sm:$0xff] %vm178, %v417
      %519 = vst.msk [vmem:[#allocation2 + $0x83] sm:$0xff] %vm178, %v422
      %520 = vst.msk [vmem:[#allocation2 + $0x8b] sm:$0xff] %vm178, %v427
      %521 = vst.msk [vmem:[#allocation2 + $0x93] sm:$0xff] %vm178, %v432
      %522 = vst.msk [vmem:[#allocation2 + $0x9b] sm:$0xff] %vm178, %v437
      %523 = vst.msk [vmem:[#allocation2 + $0xa3] sm:$0xff] %vm178, %v442
      %524 = vst.msk [vmem:[#allocation2 + $0xab] sm:$0xff] %vm178, %v447
      %525 = vst.msk [vmem:[#allocation2 + $0xb3] sm:$0xff] %vm178, %v452
      %526 = vst.msk [vmem:[#allocation2 + $0xbb] sm:$0xff] %vm178, %v457
      %527 = vst.msk [vmem:[#allocation2 + $0xc3] sm:$0xff] %vm178, %v462
      %528 = vst.msk [vmem:[#allocation2 + $0xcb] sm:$0xff] %vm178, %v467
      %529 = vst.msk [vmem:[#allocation2 + $0xd3] sm:$0xff] %vm178, %v472
      %530 = vst.msk [vmem:[#allocation2 + $0xdb] sm:$0xff] %vm178, %v477
      %531 = vst.msk [vmem:[#allocation2 + $0xe3] sm:$0xff] %vm178, %v482
      %532 = vst.msk [vmem:[#allocation2 + $0xeb] sm:$0xff] %vm178, %v487
      %533 = vst.msk [vmem:[#allocation2 + $0xf3] sm:$0xff] %vm178, %v492
      %534 = vst.msk [vmem:[#allocation2 + $0xfb] sm:$0xff] %vm178, %v497
      %v535 = vlaneseq
      %v536 = vshrl.u32 %v535, 7
      %v537 = vadd.s32 %v536, 8
      %v538 = vadd.s32 %v536, 16
      %v539 = vadd.s32 %v536, 24
      %v540 = vadd.s32 %v536, 32
      %v541 = vadd.s32 %v536, 40
      %v542 = vadd.s32 %v536, 48
      %v543 = vadd.s32 %v536, 56
      %v544 = vadd.s32 %v536, 64
      %v545 = vadd.s32 %v536, 72
      %v546 = vadd.s32 %v536, 80
      %v547 = vadd.s32 %v536, 88
      %v548 = vadd.s32 %v536, 96
      %v549 = vadd.s32 %v536, 104
      %v550 = vadd.s32 %v536, 112
      %v551 = vadd.s32 %v536, 120
      %v552 = vadd.s32 %v536, 128
      %v553 = vadd.s32 %v536, 136
      %v554 = vadd.s32 %v536, 144
      %v555 = vadd.s32 %v536, 152
      %v556 = vadd.s32 %v536, 160
      %v557 = vadd.s32 %v536, 168
      %v558 = vadd.s32 %v536, 176
      %v559 = vadd.s32 %v536, 184
      %v560 = vadd.s32 %v536, 192
      %v561 = vadd.s32 %v536, 200
      %v562 = vadd.s32 %v536, 208
      %v563 = vadd.s32 %v536, 216
      %v564 = vadd.s32 %v536, 224
      %v565 = vadd.s32 %v536, 232
      %v566 = vadd.s32 %v536, 240
      %v567 = vadd.s32 %v536, 248
      %v568 = vand.u32 %v536, 15
      %v569 = vand.u32 %v537, 15
      %v570 = vand.u32 %v538, 15
      %v571 = vand.u32 %v539, 15
      %v572 = vand.u32 %v540, 15
      %v573 = vand.u32 %v541, 15
      %v574 = vand.u32 %v542, 15
      %v575 = vand.u32 %v543, 15
      %v576 = vand.u32 %v544, 15
      %v577 = vand.u32 %v545, 15
      %v578 = vand.u32 %v546, 15
      %v579 = vand.u32 %v547, 15
      %v580 = vand.u32 %v548, 15
      %v581 = vand.u32 %v549, 15
      %v582 = vand.u32 %v550, 15
      %v583 = vand.u32 %v551, 15
      %v584 = vand.u32 %v552, 15
      %v585 = vand.u32 %v553, 15
      %v586 = vand.u32 %v554, 15
      %v587 = vand.u32 %v555, 15
      %v588 = vand.u32 %v556, 15
      %v589 = vand.u32 %v557, 15
      %v590 = vand.u32 %v558, 15
      %v591 = vand.u32 %v559, 15
      %v592 = vand.u32 %v560, 15
      %v593 = vand.u32 %v561, 15
      %v594 = vand.u32 %v562, 15
      %v595 = vand.u32 %v563, 15
      %v596 = vand.u32 %v564, 15
      %v597 = vand.u32 %v565, 15
      %v598 = vand.u32 %v566, 15
      %v599 = vand.u32 %v567, 15
      %v600 = vld [vmem:[#allocation2] sm:$0xff]
      %v601 = vld [vmem:[#allocation2 + $0x8] sm:$0xff]
      %v602 = vld [vmem:[#allocation2 + $0x10] sm:$0xff]
      %v603 = vld [vmem:[#allocation2 + $0x18] sm:$0xff]
      %v604 = vld [vmem:[#allocation2 + $0x20] sm:$0xff]
      %v605 = vld [vmem:[#allocation2 + $0x28] sm:$0xff]
      %v606 = vld [vmem:[#allocation2 + $0x30] sm:$0xff]
      %v607 = vld [vmem:[#allocation2 + $0x38] sm:$0xff]
      %v608 = vld [vmem:[#allocation2 + $0x40] sm:$0xff]
      %v609 = vld [vmem:[#allocation2 + $0x48] sm:$0xff]
      %v610 = vld [vmem:[#allocation2 + $0x50] sm:$0xff]
      %v611 = vld [vmem:[#allocation2 + $0x58] sm:$0xff]
      %v612 = vld [vmem:[#allocation2 + $0x60] sm:$0xff]
      %v613 = vld [vmem:[#allocation2 + $0x68] sm:$0xff]
      %v614 = vld [vmem:[#allocation2 + $0x70] sm:$0xff]
      %v615 = vld [vmem:[#allocation2 + $0x78] sm:$0xff]
      %v616 = vld [vmem:[#allocation2 + $0x80] sm:$0xff]
      %v617 = vld [vmem:[#allocation2 + $0x88] sm:$0xff]
      %v618 = vld [vmem:[#allocation2 + $0x90] sm:$0xff]
      %v619 = vld [vmem:[#allocation2 + $0x98] sm:$0xff]
      %v620 = vld [vmem:[#allocation2 + $0xa0] sm:$0xff]
      %v621 = vld [vmem:[#allocation2 + $0xa8] sm:$0xff]
      %v622 = vld [vmem:[#allocation2 + $0xb0] sm:$0xff]
      %v623 = vld [vmem:[#allocation2 + $0xb8] sm:$0xff]
      %v624 = vld [vmem:[#allocation2 + $0xc0] sm:$0xff]
      %v625 = vld [vmem:[#allocation2 + $0xc8] sm:$0xff]
      %v626 = vld [vmem:[#allocation2 + $0xd0] sm:$0xff]
      %v627 = vld [vmem:[#allocation2 + $0xd8] sm:$0xff]
      %v628 = vld [vmem:[#allocation2 + $0xe0] sm:$0xff]
      %v629 = vld [vmem:[#allocation2 + $0xe8] sm:$0xff]
      %v630 = vld [vmem:[#allocation2 + $0xf0] sm:$0xff]
      %v631 = vld [vmem:[#allocation2 + $0xf8] sm:$0xff]
      %vm632 = vcmp.ge.s32.totalorder %v568, 3
      %vm633 = vcmp.ge.s32.totalorder %v569, 3
      %vm634 = vcmp.ge.s32.totalorder %v570, 3
      %vm635 = vcmp.ge.s32.totalorder %v571, 3
      %vm636 = vcmp.ge.s32.totalorder %v572, 3
      %vm637 = vcmp.ge.s32.totalorder %v573, 3
      %vm638 = vcmp.ge.s32.totalorder %v574, 3
      %vm639 = vcmp.ge.s32.totalorder %v575, 3
      %vm640 = vcmp.ge.s32.totalorder %v576, 3
      %vm641 = vcmp.ge.s32.totalorder %v577, 3
      %vm642 = vcmp.ge.s32.totalorder %v578, 3
      %vm643 = vcmp.ge.s32.totalorder %v579, 3
      %vm644 = vcmp.ge.s32.totalorder %v580, 3
      %vm645 = vcmp.ge.s32.totalorder %v581, 3
      %vm646 = vcmp.ge.s32.totalorder %v582, 3
      %vm647 = vcmp.ge.s32.totalorder %v583, 3
      %vm648 = vcmp.ge.s32.totalorder %v584, 3
      %vm649 = vcmp.ge.s32.totalorder %v585, 3
      %vm650 = vcmp.ge.s32.totalorder %v586, 3
      %vm651 = vcmp.ge.s32.totalorder %v587, 3
      %vm652 = vcmp.ge.s32.totalorder %v588, 3
      %vm653 = vcmp.ge.s32.totalorder %v589, 3
      %vm654 = vcmp.ge.s32.totalorder %v590, 3
      %vm655 = vcmp.ge.s32.totalorder %v591, 3
      %vm656 = vcmp.ge.s32.totalorder %v592, 3
      %vm657 = vcmp.ge.s32.totalorder %v593, 3
      %vm658 = vcmp.ge.s32.totalorder %v594, 3
      %vm659 = vcmp.ge.s32.totalorder %v595, 3
      %vm660 = vcmp.ge.s32.totalorder %v596, 3
      %vm661 = vcmp.ge.s32.totalorder %v597, 3
      %vm662 = vcmp.ge.s32.totalorder %v598, 3
      %vm663 = vcmp.ge.s32.totalorder %v599, 3
      %vm664 = vcmp.lt.s32.totalorder %v568, 16
      %vm665 = vcmp.lt.s32.totalorder %v569, 16
      %vm666 = vcmp.lt.s32.totalorder %v570, 16
      %vm667 = vcmp.lt.s32.totalorder %v571, 16
      %vm668 = vcmp.lt.s32.totalorder %v572, 16
      %vm669 = vcmp.lt.s32.totalorder %v573, 16
      %vm670 = vcmp.lt.s32.totalorder %v574, 16
      %vm671 = vcmp.lt.s32.totalorder %v575, 16
      %vm672 = vcmp.lt.s32.totalorder %v576, 16
      %vm673 = vcmp.lt.s32.totalorder %v577, 16
      %vm674 = vcmp.lt.s32.totalorder %v578, 16
      %vm675 = vcmp.lt.s32.totalorder %v579, 16
      %vm676 = vcmp.lt.s32.totalorder %v580, 16
      %vm677 = vcmp.lt.s32.totalorder %v581, 16
      %vm678 = vcmp.lt.s32.totalorder %v582, 16
      %vm679 = vcmp.lt.s32.totalorder %v583, 16
      %vm680 = vcmp.lt.s32.totalorder %v584, 16
      %vm681 = vcmp.lt.s32.totalorder %v585, 16
      %vm682 = vcmp.lt.s32.totalorder %v586, 16
      %vm683 = vcmp.lt.s32.totalorder %v587, 16
      %vm684 = vcmp.lt.s32.totalorder %v588, 16
      %vm685 = vcmp.lt.s32.totalorder %v589, 16
      %vm686 = vcmp.lt.s32.totalorder %v590, 16
      %vm687 = vcmp.lt.s32.totalorder %v591, 16
      %vm688 = vcmp.lt.s32.totalorder %v592, 16
      %vm689 = vcmp.lt.s32.totalorder %v593, 16
      %vm690 = vcmp.lt.s32.totalorder %v594, 16
      %vm691 = vcmp.lt.s32.totalorder %v595, 16
      %vm692 = vcmp.lt.s32.totalorder %v596, 16
      %vm693 = vcmp.lt.s32.totalorder %v597, 16
      %vm694 = vcmp.lt.s32.totalorder %v598, 16
      %vm695 = vcmp.lt.s32.totalorder %v599, 16
      %vm696 = vmand %vm632, %vm664
      %vm697 = vmand %vm633, %vm665
      %vm698 = vmand %vm634, %vm666
      %vm699 = vmand %vm635, %vm667
      %vm700 = vmand %vm636, %vm668
      %vm701 = vmand %vm637, %vm669
      %vm702 = vmand %vm638, %vm670
      %vm703 = vmand %vm639, %vm671
      %vm704 = vmand %vm640, %vm672
      %vm705 = vmand %vm641, %vm673
      %vm706 = vmand %vm642, %vm674
      %vm707 = vmand %vm643, %vm675
      %vm708 = vmand %vm644, %vm676
      %vm709 = vmand %vm645, %vm677
      %vm710 = vmand %vm646, %vm678
      %vm711 = vmand %vm647, %vm679
      %vm712 = vmand %vm648, %vm680
      %vm713 = vmand %vm649, %vm681
      %vm714 = vmand %vm650, %vm682
      %vm715 = vmand %vm651, %vm683
      %vm716 = vmand %vm652, %vm684
      %vm717 = vmand %vm653, %vm685
      %vm718 = vmand %vm654, %vm686
      %vm719 = vmand %vm655, %vm687
      %vm720 = vmand %vm656, %vm688
      %vm721 = vmand %vm657, %vm689
      %vm722 = vmand %vm658, %vm690
      %vm723 = vmand %vm659, %vm691
      %vm724 = vmand %vm660, %vm692
      %vm725 = vmand %vm661, %vm693
      %vm726 = vmand %vm662, %vm694
      %vm727 = vmand %vm663, %vm695
      %v728 = vsel %vm696, %v600, 0.0
      %v729 = vsel %vm697, %v601, 0.0
      %v730 = vsel %vm698, %v602, 0.0
      %v731 = vsel %vm699, %v603, 0.0
      %v732 = vsel %vm700, %v604, 0.0
      %v733 = vsel %vm701, %v605, 0.0
      %v734 = vsel %vm702, %v606, 0.0
      %v735 = vsel %vm703, %v607, 0.0
      %v736 = vsel %vm704, %v608, 0.0
      %v737 = vsel %vm705, %v609, 0.0
      %v738 = vsel %vm706, %v610, 0.0
      %v739 = vsel %vm707, %v611, 0.0
      %v740 = vsel %vm708, %v612, 0.0
      %v741 = vsel %vm709, %v613, 0.0
      %v742 = vsel %vm710, %v614, 0.0
      %v743 = vsel %vm711, %v615, 0.0
      %v744 = vsel %vm712, %v616, 0.0
      %v745 = vsel %vm713, %v617, 0.0
      %v746 = vsel %vm714, %v618, 0.0
      %v747 = vsel %vm715, %v619, 0.0
      %v748 = vsel %vm716, %v620, 0.0
      %v749 = vsel %vm717, %v621, 0.0
      %v750 = vsel %vm718, %v622, 0.0
      %v751 = vsel %vm719, %v623, 0.0
      %v752 = vsel %vm720, %v624, 0.0
      %v753 = vsel %vm721, %v625, 0.0
      %v754 = vsel %vm722, %v626, 0.0
      %v755 = vsel %vm723, %v627, 0.0
      %v756 = vsel %vm724, %v628, 0.0
      %v757 = vsel %vm725, %v629, 0.0
      %v758 = vsel %vm726, %v630, 0.0
      %v759 = vsel %vm727, %v631, 0.0
      %v760 = vmul.f32 %v728, 0.004565692
      %v761 = vmul.f32 %v729, 0.004565692
      %v762 = vmul.f32 %v730, 0.004565692
      %v763 = vmul.f32 %v731, 0.004565692
      %v764 = vmul.f32 %v732, 0.004565692
      %v765 = vmul.f32 %v733, 0.004565692
      %v766 = vmul.f32 %v734, 0.004565692
      %v767 = vmul.f32 %v735, 0.004565692
      %v768 = vmul.f32 %v736, 0.004565692
      %v769 = vmul.f32 %v737, 0.004565692
      %v770 = vmul.f32 %v738, 0.004565692
      %v771 = vmul.f32 %v739, 0.004565692
      %v772 = vmul.f32 %v740, 0.004565692
      %v773 = vmul.f32 %v741, 0.004565692
      %v774 = vmul.f32 %v742, 0.004565692
      %v775 = vmul.f32 %v743, 0.004565692
      %v776 = vmul.f32 %v744, 0.004565692
      %v777 = vmul.f32 %v745, 0.004565692
      %v778 = vmul.f32 %v746, 0.004565692
      %v779 = vmul.f32 %v747, 0.004565692
      %v780 = vmul.f32 %v748, 0.004565692
      %v781 = vmul.f32 %v749, 0.004565692
      %v782 = vmul.f32 %v750, 0.004565692
      %v783 = vmul.f32 %v751, 0.004565692
      %v784 = vmul.f32 %v752, 0.004565692
      %v785 = vmul.f32 %v753, 0.004565692
      %v786 = vmul.f32 %v754, 0.004565692
      %v787 = vmul.f32 %v755, 0.004565692
      %v788 = vmul.f32 %v756, 0.004565692
      %v789 = vmul.f32 %v757, 0.004565692
      %v790 = vmul.f32 %v758, 0.004565692
      %v791 = vmul.f32 %v759, 0.004565692
      %v792 = vld [vmem:[#allocation2 + $0x1] sm:$0xff]
      %v793 = vld [vmem:[#allocation2 + $0x9] sm:$0xff]
      %v794 = vld [vmem:[#allocation2 + $0x11] sm:$0xff]
      %v795 = vld [vmem:[#allocation2 + $0x19] sm:$0xff]
      %v796 = vld [vmem:[#allocation2 + $0x21] sm:$0xff]
      %v797 = vld [vmem:[#allocation2 + $0x29] sm:$0xff]
      %v798 = vld [vmem:[#allocation2 + $0x31] sm:$0xff]
      %v799 = vld [vmem:[#allocation2 + $0x39] sm:$0xff]
      %v800 = vld [vmem:[#allocation2 + $0x41] sm:$0xff]
      %v801 = vld [vmem:[#allocation2 + $0x49] sm:$0xff]
      %v802 = vld [vmem:[#allocation2 + $0x51] sm:$0xff]
      %v803 = vld [vmem:[#allocation2 + $0x59] sm:$0xff]
      %v804 = vld [vmem:[#allocation2 + $0x61] sm:$0xff]
      %v805 = vld [vmem:[#allocation2 + $0x69] sm:$0xff]
      %v806 = vld [vmem:[#allocation2 + $0x71] sm:$0xff]
      %v807 = vld [vmem:[#allocation2 + $0x79] sm:$0xff]
      %v808 = vld [vmem:[#allocation2 + $0x81] sm:$0xff]
      %v809 = vld [vmem:[#allocation2 + $0x89] sm:$0xff]
      %v810 = vld [vmem:[#allocation2 + $0x91] sm:$0xff]
      %v811 = vld [vmem:[#allocation2 + $0x99] sm:$0xff]
      %v812 = vld [vmem:[#allocation2 + $0xa1] sm:$0xff]
      %v813 = vld [vmem:[#allocation2 + $0xa9] sm:$0xff]
      %v814 = vld [vmem:[#allocation2 + $0xb1] sm:$0xff]
      %v815 = vld [vmem:[#allocation2 + $0xb9] sm:$0xff]
      %v816 = vld [vmem:[#allocation2 + $0xc1] sm:$0xff]
      %v817 = vld [vmem:[#allocation2 + $0xc9] sm:$0xff]
      %v818 = vld [vmem:[#allocation2 + $0xd1] sm:$0xff]
      %v819 = vld [vmem:[#allocation2 + $0xd9] sm:$0xff]
      %v820 = vld [vmem:[#allocation2 + $0xe1] sm:$0xff]
      %v821 = vld [vmem:[#allocation2 + $0xe9] sm:$0xff]
      %v822 = vld [vmem:[#allocation2 + $0xf1] sm:$0xff]
      %v823 = vld [vmem:[#allocation2 + $0xf9] sm:$0xff]
      %vm824 = vcmp.ge.s32.totalorder %v568, 2
      %vm825 = vcmp.ge.s32.totalorder %v569, 2
      %vm826 = vcmp.ge.s32.totalorder %v570, 2
      %vm827 = vcmp.ge.s32.totalorder %v571, 2
      %vm828 = vcmp.ge.s32.totalorder %v572, 2
      %vm829 = vcmp.ge.s32.totalorder %v573, 2
      %vm830 = vcmp.ge.s32.totalorder %v574, 2
      %vm831 = vcmp.ge.s32.totalorder %v575, 2
      %vm832 = vcmp.ge.s32.totalorder %v576, 2
      %vm833 = vcmp.ge.s32.totalorder %v577, 2
      %vm834 = vcmp.ge.s32.totalorder %v578, 2
      %vm835 = vcmp.ge.s32.totalorder %v579, 2
      %vm836 = vcmp.ge.s32.totalorder %v580, 2
      %vm837 = vcmp.ge.s32.totalorder %v581, 2
      %vm838 = vcmp.ge.s32.totalorder %v582, 2
      %vm839 = vcmp.ge.s32.totalorder %v583, 2
      %vm840 = vcmp.ge.s32.totalorder %v584, 2
      %vm841 = vcmp.ge.s32.totalorder %v585, 2
      %vm842 = vcmp.ge.s32.totalorder %v586, 2
      %vm843 = vcmp.ge.s32.totalorder %v587, 2
      %vm844 = vcmp.ge.s32.totalorder %v588, 2
      %vm845 = vcmp.ge.s32.totalorder %v589, 2
      %vm846 = vcmp.ge.s32.totalorder %v590, 2
      %vm847 = vcmp.ge.s32.totalorder %v591, 2
      %vm848 = vcmp.ge.s32.totalorder %v592, 2
      %vm849 = vcmp.ge.s32.totalorder %v593, 2
      %vm850 = vcmp.ge.s32.totalorder %v594, 2
      %vm851 = vcmp.ge.s32.totalorder %v595, 2
      %vm852 = vcmp.ge.s32.totalorder %v596, 2
      %vm853 = vcmp.ge.s32.totalorder %v597, 2
      %vm854 = vcmp.ge.s32.totalorder %v598, 2
      %vm855 = vcmp.ge.s32.totalorder %v599, 2
      %vm856 = vmand %vm824, %vm664
      %vm857 = vmand %vm825, %vm665
      %vm858 = vmand %vm826, %vm666
      %vm859 = vmand %vm827, %vm667
      %vm860 = vmand %vm828, %vm668
      %vm861 = vmand %vm829, %vm669
      %vm862 = vmand %vm830, %vm670
      %vm863 = vmand %vm831, %vm671
      %vm864 = vmand %vm832, %vm672
      %vm865 = vmand %vm833, %vm673
      %vm866 = vmand %vm834, %vm674
      %vm867 = vmand %vm835, %vm675
      %vm868 = vmand %vm836, %vm676
      %vm869 = vmand %vm837, %vm677
      %vm870 = vmand %vm838, %vm678
      %vm871 = vmand %vm839, %vm679
      %vm872 = vmand %vm840, %vm680
      %vm873 = vmand %vm841, %vm681
      %vm874 = vmand %vm842, %vm682
      %vm875 = vmand %vm843, %vm683
      %vm876 = vmand %vm844, %vm684
      %vm877 = vmand %vm845, %vm685
      %vm878 = vmand %vm846, %vm686
      %vm879 = vmand %vm847, %vm687
      %vm880 = vmand %vm848, %vm688
      %vm881 = vmand %vm849, %vm689
      %vm882 = vmand %vm850, %vm690
      %vm883 = vmand %vm851, %vm691
      %vm884 = vmand %vm852, %vm692
      %vm885 = vmand %vm853, %vm693
      %vm886 = vmand %vm854, %vm694
      %vm887 = vmand %vm855, %vm695
      %v888 = vsel %vm856, %v792, 0.0
      %v889 = vsel %vm857, %v793, 0.0
      %v890 = vsel %vm858, %v794, 0.0
      %v891 = vsel %vm859, %v795, 0.0
      %v892 = vsel %vm860, %v796, 0.0
      %v893 = vsel %vm861, %v797, 0.0
      %v894 = vsel %vm862, %v798, 0.0
      %v895 = vsel %vm863, %v799, 0.0
      %v896 = vsel %vm864, %v800, 0.0
      %v897 = vsel %vm865, %v801, 0.0
      %v898 = vsel %vm866, %v802, 0.0
      %v899 = vsel %vm867, %v803, 0.0
      %v900 = vsel %vm868, %v804, 0.0
      %v901 = vsel %vm869, %v805, 0.0
      %v902 = vsel %vm870, %v806, 0.0
      %v903 = vsel %vm871, %v807, 0.0
      %v904 = vsel %vm872, %v808, 0.0
      %v905 = vsel %vm873, %v809, 0.0
      %v906 = vsel %vm874, %v810, 0.0
      %v907 = vsel %vm875, %v811, 0.0
      %v908 = vsel %vm876, %v812, 0.0
      %v909 = vsel %vm877, %v813, 0.0
      %v910 = vsel %vm878, %v814, 0.0
      %v911 = vsel %vm879, %v815, 0.0
      %v912 = vsel %vm880, %v816, 0.0
      %v913 = vsel %vm881, %v817, 0.0
      %v914 = vsel %vm882, %v818, 0.0
      %v915 = vsel %vm883, %v819, 0.0
      %v916 = vsel %vm884, %v820, 0.0
      %v917 = vsel %vm885, %v821, 0.0
      %v918 = vsel %vm886, %v822, 0.0
      %v919 = vsel %vm887, %v823, 0.0
      %v920 = vmul.f32 %v888, 0.053991128
      %v921 = vmul.f32 %v889, 0.053991128
      %v922 = vmul.f32 %v890, 0.053991128
      %v923 = vmul.f32 %v891, 0.053991128
      %v924 = vmul.f32 %v892, 0.053991128
      %v925 = vmul.f32 %v893, 0.053991128
      %v926 = vmul.f32 %v894, 0.053991128
      %v927 = vmul.f32 %v895, 0.053991128
      %v928 = vmul.f32 %v896, 0.053991128
      %v929 = vmul.f32 %v897, 0.053991128
      %v930 = vmul.f32 %v898, 0.053991128
      %v931 = vmul.f32 %v899, 0.053991128
      %v932 = vmul.f32 %v900, 0.053991128
      %v933 = vmul.f32 %v901, 0.053991128
      %v934 = vmul.f32 %v902, 0.053991128
      %v935 = vmul.f32 %v903, 0.053991128
      %v936 = vmul.f32 %v904, 0.053991128
      %v937 = vmul.f32 %v905, 0.053991128
      %v938 = vmul.f32 %v906, 0.053991128
      %v939 = vmul.f32 %v907, 0.053991128
      %v940 = vmul.f32 %v908, 0.053991128
      %v941 = vmul.f32 %v909, 0.053991128
      %v942 = vmul.f32 %v910, 0.053991128
      %v943 = vmul.f32 %v911, 0.053991128
      %v944 = vmul.f32 %v912, 0.053991128
      %v945 = vmul.f32 %v913, 0.053991128
      %v946 = vmul.f32 %v914, 0.053991128
      %v947 = vmul.f32 %v915, 0.053991128
      %v948 = vmul.f32 %v916, 0.053991128
      %v949 = vmul.f32 %v917, 0.053991128
      %v950 = vmul.f32 %v918, 0.053991128
      %v951 = vmul.f32 %v919, 0.053991128
      %v952 = vadd.f32 %v760, %v920
      %v953 = vadd.f32 %v761, %v921
      %v954 = vadd.f32 %v762, %v922
      %v955 = vadd.f32 %v763, %v923
      %v956 = vadd.f32 %v764, %v924
      %v957 = vadd.f32 %v765, %v925
      %v958 = vadd.f32 %v766, %v926
      %v959 = vadd.f32 %v767, %v927
      %v960 = vadd.f32 %v768, %v928
      %v961 = vadd.f32 %v769, %v929
      %v962 = vadd.f32 %v770, %v930
      %v963 = vadd.f32 %v771, %v931
      %v964 = vadd.f32 %v772, %v932
      %v965 = vadd.f32 %v773, %v933
      %v966 = vadd.f32 %v774, %v934
      %v967 = vadd.f32 %v775, %v935
      %v968 = vadd.f32 %v776, %v936
      %v969 = vadd.f32 %v777, %v937
      %v970 = vadd.f32 %v778, %v938
      %v971 = vadd.f32 %v779, %v939
      %v972 = vadd.f32 %v780, %v940
      %v973 = vadd.f32 %v781, %v941
      %v974 = vadd.f32 %v782, %v942
      %v975 = vadd.f32 %v783, %v943
      %v976 = vadd.f32 %v784, %v944
      %v977 = vadd.f32 %v785, %v945
      %v978 = vadd.f32 %v786, %v946
      %v979 = vadd.f32 %v787, %v947
      %v980 = vadd.f32 %v788, %v948
      %v981 = vadd.f32 %v789, %v949
      %v982 = vadd.f32 %v790, %v950
      %v983 = vadd.f32 %v791, %v951
      %v984 = vld [vmem:[#allocation2 + $0x2] sm:$0xff]
      %v985 = vld [vmem:[#allocation2 + $0xa] sm:$0xff]
      %v986 = vld [vmem:[#allocation2 + $0x12] sm:$0xff]
      %v987 = vld [vmem:[#allocation2 + $0x1a] sm:$0xff]
      %v988 = vld [vmem:[#allocation2 + $0x22] sm:$0xff]
      %v989 = vld [vmem:[#allocation2 + $0x2a] sm:$0xff]
      %v990 = vld [vmem:[#allocation2 + $0x32] sm:$0xff]
      %v991 = vld [vmem:[#allocation2 + $0x3a] sm:$0xff]
      %v992 = vld [vmem:[#allocation2 + $0x42] sm:$0xff]
      %v993 = vld [vmem:[#allocation2 + $0x4a] sm:$0xff]
      %v994 = vld [vmem:[#allocation2 + $0x52] sm:$0xff]
      %v995 = vld [vmem:[#allocation2 + $0x5a] sm:$0xff]
      %v996 = vld [vmem:[#allocation2 + $0x62] sm:$0xff]
      %v997 = vld [vmem:[#allocation2 + $0x6a] sm:$0xff]
      %v998 = vld [vmem:[#allocation2 + $0x72] sm:$0xff]
      %v999 = vld [vmem:[#allocation2 + $0x7a] sm:$0xff]
      %v1000 = vld [vmem:[#allocation2 + $0x82] sm:$0xff]
      %v1001 = vld [vmem:[#allocation2 + $0x8a] sm:$0xff]
      %v1002 = vld [vmem:[#allocation2 + $0x92] sm:$0xff]
      %v1003 = vld [vmem:[#allocation2 + $0x9a] sm:$0xff]
      %v1004 = vld [vmem:[#allocation2 + $0xa2] sm:$0xff]
      %v1005 = vld [vmem:[#allocation2 + $0xaa] sm:$0xff]
      %v1006 = vld [vmem:[#allocation2 + $0xb2] sm:$0xff]
      %v1007 = vld [vmem:[#allocation2 + $0xba] sm:$0xff]
      %v1008 = vld [vmem:[#allocation2 + $0xc2] sm:$0xff]
      %v1009 = vld [vmem:[#allocation2 + $0xca] sm:$0xff]
      %v1010 = vld [vmem:[#allocation2 + $0xd2] sm:$0xff]
      %v1011 = vld [vmem:[#allocation2 + $0xda] sm:$0xff]
      %v1012 = vld [vmem:[#allocation2 + $0xe2] sm:$0xff]
      %v1013 = vld [vmem:[#allocation2 + $0xea] sm:$0xff]
      %v1014 = vld [vmem:[#allocation2 + $0xf2] sm:$0xff]
      %v1015 = vld [vmem:[#allocation2 + $0xfa] sm:$0xff]
      %vm1016 = vcmp.ge.s32.totalorder %v568, 1
      %vm1017 = vcmp.ge.s32.totalorder %v569, 1
      %vm1018 = vcmp.ge.s32.totalorder %v570, 1
      %vm1019 = vcmp.ge.s32.totalorder %v571, 1
      %vm1020 = vcmp.ge.s32.totalorder %v572, 1
      %vm1021 = vcmp.ge.s32.totalorder %v573, 1
      %vm1022 = vcmp.ge.s32.totalorder %v574, 1
      %vm1023 = vcmp.ge.s32.totalorder %v575, 1
      %vm1024 = vcmp.ge.s32.totalorder %v576, 1
      %vm1025 = vcmp.ge.s32.totalorder %v577, 1
      %vm1026 = vcmp.ge.s32.totalorder %v578, 1
      %vm1027 = vcmp.ge.s32.totalorder %v579, 1
      %vm1028 = vcmp.ge.s32.totalorder %v580, 1
      %vm1029 = vcmp.ge.s32.totalorder %v581, 1
      %vm1030 = vcmp.ge.s32.totalorder %v582, 1
      %vm1031 = vcmp.ge.s32.totalorder %v583, 1
      %vm1032 = vcmp.ge.s32.totalorder %v584, 1
      %vm1033 = vcmp.ge.s32.totalorder %v585, 1
      %vm1034 = vcmp.ge.s32.totalorder %v586, 1
      %vm1035 = vcmp.ge.s32.totalorder %v587, 1
      %vm1036 = vcmp.ge.s32.totalorder %v588, 1
      %vm1037 = vcmp.ge.s32.totalorder %v589, 1
      %vm1038 = vcmp.ge.s32.totalorder %v590, 1
      %vm1039 = vcmp.ge.s32.totalorder %v591, 1
      %vm1040 = vcmp.ge.s32.totalorder %v592, 1
      %vm1041 = vcmp.ge.s32.totalorder %v593, 1
      %vm1042 = vcmp.ge.s32.totalorder %v594, 1
      %vm1043 = vcmp.ge.s32.totalorder %v595, 1
      %vm1044 = vcmp.ge.s32.totalorder %v596, 1
      %vm1045 = vcmp.ge.s32.totalorder %v597, 1
      %vm1046 = vcmp.ge.s32.totalorder %v598, 1
      %vm1047 = vcmp.ge.s32.totalorder %v599, 1
      %vm1048 = vmand %vm1016, %vm664
      %vm1049 = vmand %vm1017, %vm665
      %vm1050 = vmand %vm1018, %vm666
      %vm1051 = vmand %vm1019, %vm667
      %vm1052 = vmand %vm1020, %vm668
      %vm1053 = vmand %vm1021, %vm669
      %vm1054 = vmand %vm1022, %vm670
      %vm1055 = vmand %vm1023, %vm671
      %vm1056 = vmand %vm1024, %vm672
      %vm1057 = vmand %vm1025, %vm673
      %vm1058 = vmand %vm1026, %vm674
      %vm1059 = vmand %vm1027, %vm675
      %vm1060 = vmand %vm1028, %vm676
      %vm1061 = vmand %vm1029, %vm677
      %vm1062 = vmand %vm1030, %vm678
      %vm1063 = vmand %vm1031, %vm679
      %vm1064 = vmand %vm1032, %vm680
      %vm1065 = vmand %vm1033, %vm681
      %vm1066 = vmand %vm1034, %vm682
      %vm1067 = vmand %vm1035, %vm683
      %vm1068 = vmand %vm1036, %vm684
      %vm1069 = vmand %vm1037, %vm685
      %vm1070 = vmand %vm1038, %vm686
      %vm1071 = vmand %vm1039, %vm687
      %vm1072 = vmand %vm1040, %vm688
      %vm1073 = vmand %vm1041, %vm689
      %vm1074 = vmand %vm1042, %vm690
      %vm1075 = vmand %vm1043, %vm691
      %vm1076 = vmand %vm1044, %vm692
      %vm1077 = vmand %vm1045, %vm693
      %vm1078 = vmand %vm1046, %vm694
      %vm1079 = vmand %vm1047, %vm695
      %v1080 = vsel %vm1048, %v984, 0.0
      %v1081 = vsel %vm1049, %v985, 0.0
      %v1082 = vsel %vm1050, %v986, 0.0
      %v1083 = vsel %vm1051, %v987, 0.0
      %v1084 = vsel %vm1052, %v988, 0.0
      %v1085 = vsel %vm1053, %v989, 0.0
      %v1086 = vsel %vm1054, %v990, 0.0
      %v1087 = vsel %vm1055, %v991, 0.0
      %v1088 = vsel %vm1056, %v992, 0.0
      %v1089 = vsel %vm1057, %v993, 0.0
      %v1090 = vsel %vm1058, %v994, 0.0
      %v1091 = vsel %vm1059, %v995, 0.0
      %v1092 = vsel %vm1060, %v996, 0.0
      %v1093 = vsel %vm1061, %v997, 0.0
      %v1094 = vsel %vm1062, %v998, 0.0
      %v1095 = vsel %vm1063, %v999, 0.0
      %v1096 = vsel %vm1064, %v1000, 0.0
      %v1097 = vsel %vm1065, %v1001, 0.0
      %v1098 = vsel %vm1066, %v1002, 0.0
      %v1099 = vsel %vm1067, %v1003, 0.0
      %v1100 = vsel %vm1068, %v1004, 0.0
      %v1101 = vsel %vm1069, %v1005, 0.0
      %v1102 = vsel %vm1070, %v1006, 0.0
      %v1103 = vsel %vm1071, %v1007, 0.0
      %v1104 = vsel %vm1072, %v1008, 0.0
      %v1105 = vsel %vm1073, %v1009, 0.0
      %v1106 = vsel %vm1074, %v1010, 0.0
      %v1107 = vsel %vm1075, %v1011, 0.0
      %v1108 = vsel %vm1076, %v1012, 0.0
      %v1109 = vsel %vm1077, %v1013, 0.0
      %v1110 = vsel %vm1078, %v1014, 0.0
      %v1111 = vsel %vm1079, %v1015, 0.0
      %v1112 = vmul.f32 %v1080, 0.24197145
      %v1113 = vmul.f32 %v1081, 0.24197145
      %v1114 = vmul.f32 %v1082, 0.24197145
      %v1115 = vmul.f32 %v1083, 0.24197145
      %v1116 = vmul.f32 %v1084, 0.24197145
      %v1117 = vmul.f32 %v1085, 0.24197145
      %v1118 = vmul.f32 %v1086, 0.24197145
      %v1119 = vmul.f32 %v1087, 0.24197145
      %v1120 = vmul.f32 %v1088, 0.24197145
      %v1121 = vmul.f32 %v1089, 0.24197145
      %v1122 = vmul.f32 %v1090, 0.24197145
      %v1123 = vmul.f32 %v1091, 0.24197145
      %v1124 = vmul.f32 %v1092, 0.24197145
      %v1125 = vmul.f32 %v1093, 0.24197145
      %v1126 = vmul.f32 %v1094, 0.24197145
      %v1127 = vmul.f32 %v1095, 0.24197145
      %v1128 = vmul.f32 %v1096, 0.24197145
      %v1129 = vmul.f32 %v1097, 0.24197145
      %v1130 = vmul.f32 %v1098, 0.24197145
      %v1131 = vmul.f32 %v1099, 0.24197145
      %v1132 = vmul.f32 %v1100, 0.24197145
      %v1133 = vmul.f32 %v1101, 0.24197145
      %v1134 = vmul.f32 %v1102, 0.24197145
      %v1135 = vmul.f32 %v1103, 0.24197145
      %v1136 = vmul.f32 %v1104, 0.24197145
      %v1137 = vmul.f32 %v1105, 0.24197145
      %v1138 = vmul.f32 %v1106, 0.24197145
      %v1139 = vmul.f32 %v1107, 0.24197145
      %v1140 = vmul.f32 %v1108, 0.24197145
      %v1141 = vmul.f32 %v1109, 0.24197145
      %v1142 = vmul.f32 %v1110, 0.24197145
      %v1143 = vmul.f32 %v1111, 0.24197145
      %v1144 = vadd.f32 %v952, %v1112
      %v1145 = vadd.f32 %v953, %v1113
      %v1146 = vadd.f32 %v954, %v1114
      %v1147 = vadd.f32 %v955, %v1115
      %v1148 = vadd.f32 %v956, %v1116
      %v1149 = vadd.f32 %v957, %v1117
      %v1150 = vadd.f32 %v958, %v1118
      %v1151 = vadd.f32 %v959, %v1119
      %v1152 = vadd.f32 %v960, %v1120
      %v1153 = vadd.f32 %v961, %v1121
      %v1154 = vadd.f32 %v962, %v1122
      %v1155 = vadd.f32 %v963, %v1123
      %v1156 = vadd.f32 %v964, %v1124
      %v1157 = vadd.f32 %v965, %v1125
      %v1158 = vadd.f32 %v966, %v1126
      %v1159 = vadd.f32 %v967, %v1127
      %v1160 = vadd.f32 %v968, %v1128
      %v1161 = vadd.f32 %v969, %v1129
      %v1162 = vadd.f32 %v970, %v1130
      %v1163 = vadd.f32 %v971, %v1131
      %v1164 = vadd.f32 %v972, %v1132
      %v1165 = vadd.f32 %v973, %v1133
      %v1166 = vadd.f32 %v974, %v1134
      %v1167 = vadd.f32 %v975, %v1135
      %v1168 = vadd.f32 %v976, %v1136
      %v1169 = vadd.f32 %v977, %v1137
      %v1170 = vadd.f32 %v978, %v1138
      %v1171 = vadd.f32 %v979, %v1139
      %v1172 = vadd.f32 %v980, %v1140
      %v1173 = vadd.f32 %v981, %v1141
      %v1174 = vadd.f32 %v982, %v1142
      %v1175 = vadd.f32 %v983, %v1143
      %v1176 = vld [vmem:[#allocation2 + $0x3] sm:$0xff]
      %v1177 = vld [vmem:[#allocation2 + $0xb] sm:$0xff]
      %v1178 = vld [vmem:[#allocation2 + $0x13] sm:$0xff]
      %v1179 = vld [vmem:[#allocation2 + $0x1b] sm:$0xff]
      %v1180 = vld [vmem:[#allocation2 + $0x23] sm:$0xff]
      %v1181 = vld [vmem:[#allocation2 + $0x2b] sm:$0xff]
      %v1182 = vld [vmem:[#allocation2 + $0x33] sm:$0xff]
      %v1183 = vld [vmem:[#allocation2 + $0x3b] sm:$0xff]
      %v1184 = vld [vmem:[#allocation2 + $0x43] sm:$0xff]
      %v1185 = vld [vmem:[#allocation2 + $0x4b] sm:$0xff]
      %v1186 = vld [vmem:[#allocation2 + $0x53] sm:$0xff]
      %v1187 = vld [vmem:[#allocation2 + $0x5b] sm:$0xff]
      %v1188 = vld [vmem:[#allocation2 + $0x63] sm:$0xff]
      %v1189 = vld [vmem:[#allocation2 + $0x6b] sm:$0xff]
      %v1190 = vld [vmem:[#allocation2 + $0x73] sm:$0xff]
      %v1191 = vld [vmem:[#allocation2 + $0x7b] sm:$0xff]
      %v1192 = vld [vmem:[#allocation2 + $0x83] sm:$0xff]
      %v1193 = vld [vmem:[#allocation2 + $0x8b] sm:$0xff]
      %v1194 = vld [vmem:[#allocation2 + $0x93] sm:$0xff]
      %v1195 = vld [vmem:[#allocation2 + $0x9b] sm:$0xff]
      %v1196 = vld [vmem:[#allocation2 + $0xa3] sm:$0xff]
      %v1197 = vld [vmem:[#allocation2 + $0xab] sm:$0xff]
      %v1198 = vld [vmem:[#allocation2 + $0xb3] sm:$0xff]
      %v1199 = vld [vmem:[#allocation2 + $0xbb] sm:$0xff]
      %v1200 = vld [vmem:[#allocation2 + $0xc3] sm:$0xff]
      %v1201 = vld [vmem:[#allocation2 + $0xcb] sm:$0xff]
      %v1202 = vld [vmem:[#allocation2 + $0xd3] sm:$0xff]
      %v1203 = vld [vmem:[#allocation2 + $0xdb] sm:$0xff]
      %v1204 = vld [vmem:[#allocation2 + $0xe3] sm:$0xff]
      %v1205 = vld [vmem:[#allocation2 + $0xeb] sm:$0xff]
      %v1206 = vld [vmem:[#allocation2 + $0xf3] sm:$0xff]
      %v1207 = vld [vmem:[#allocation2 + $0xfb] sm:$0xff]
      %v1208 = vmul.f32 %v1176, 0.39894348
      %v1209 = vmul.f32 %v1177, 0.39894348
      %v1210 = vmul.f32 %v1178, 0.39894348
      %v1211 = vmul.f32 %v1179, 0.39894348
      %v1212 = vmul.f32 %v1180, 0.39894348
      %v1213 = vmul.f32 %v1181, 0.39894348
      %v1214 = vmul.f32 %v1182, 0.39894348
      %v1215 = vmul.f32 %v1183, 0.39894348
      %v1216 = vmul.f32 %v1184, 0.39894348
      %v1217 = vmul.f32 %v1185, 0.39894348
      %v1218 = vmul.f32 %v1186, 0.39894348
      %v1219 = vmul.f32 %v1187, 0.39894348
      %v1220 = vmul.f32 %v1188, 0.39894348
      %v1221 = vmul.f32 %v1189, 0.39894348
      %v1222 = vmul.f32 %v1190, 0.39894348
      %v1223 = vmul.f32 %v1191, 0.39894348
      %v1224 = vmul.f32 %v1192, 0.39894348
      %v1225 = vmul.f32 %v1193, 0.39894348
      %v1226 = vmul.f32 %v1194, 0.39894348
      %v1227 = vmul.f32 %v1195, 0.39894348
      %v1228 = vmul.f32 %v1196, 0.39894348
      %v1229 = vmul.f32 %v1197, 0.39894348
      %v1230 = vmul.f32 %v1198, 0.39894348
      %v1231 = vmul.f32 %v1199, 0.39894348
      %v1232 = vmul.f32 %v1200, 0.39894348
      %v1233 = vmul.f32 %v1201, 0.39894348
      %v1234 = vmul.f32 %v1202, 0.39894348
      %v1235 = vmul.f32 %v1203, 0.39894348
      %v1236 = vmul.f32 %v1204, 0.39894348
      %v1237 = vmul.f32 %v1205, 0.39894348
      %v1238 = vmul.f32 %v1206, 0.39894348
      %v1239 = vmul.f32 %v1207, 0.39894348
      %v1240 = vadd.f32 %v1144, %v1208
      %v1241 = vadd.f32 %v1145, %v1209
      %v1242 = vadd.f32 %v1146, %v1210
      %v1243 = vadd.f32 %v1147, %v1211
      %v1244 = vadd.f32 %v1148, %v1212
      %v1245 = vadd.f32 %v1149, %v1213
      %v1246 = vadd.f32 %v1150, %v1214
      %v1247 = vadd.f32 %v1151, %v1215
      %v1248 = vadd.f32 %v1152, %v1216
      %v1249 = vadd.f32 %v1153, %v1217
      %v1250 = vadd.f32 %v1154, %v1218
      %v1251 = vadd.f32 %v1155, %v1219
      %v1252 = vadd.f32 %v1156, %v1220
      %v1253 = vadd.f32 %v1157, %v1221
      %v1254 = vadd.f32 %v1158, %v1222
      %v1255 = vadd.f32 %v1159, %v1223
      %v1256 = vadd.f32 %v1160, %v1224
      %v1257 = vadd.f32 %v1161, %v1225
      %v1258 = vadd.f32 %v1162, %v1226
      %v1259 = vadd.f32 %v1163, %v1227
      %v1260 = vadd.f32 %v1164, %v1228
      %v1261 = vadd.f32 %v1165, %v1229
      %v1262 = vadd.f32 %v1166, %v1230
      %v1263 = vadd.f32 %v1167, %v1231
      %v1264 = vadd.f32 %v1168, %v1232
      %v1265 = vadd.f32 %v1169, %v1233
      %v1266 = vadd.f32 %v1170, %v1234
      %v1267 = vadd.f32 %v1171, %v1235
      %v1268 = vadd.f32 %v1172, %v1236
      %v1269 = vadd.f32 %v1173, %v1237
      %v1270 = vadd.f32 %v1174, %v1238
      %v1271 = vadd.f32 %v1175, %v1239
      %v1272 = vld [vmem:[#allocation2 + $0x4] sm:$0xff]
      %v1273 = vld [vmem:[#allocation2 + $0xc] sm:$0xff]
      %v1274 = vld [vmem:[#allocation2 + $0x14] sm:$0xff]
      %v1275 = vld [vmem:[#allocation2 + $0x1c] sm:$0xff]
      %v1276 = vld [vmem:[#allocation2 + $0x24] sm:$0xff]
      %v1277 = vld [vmem:[#allocation2 + $0x2c] sm:$0xff]
      %v1278 = vld [vmem:[#allocation2 + $0x34] sm:$0xff]
      %v1279 = vld [vmem:[#allocation2 + $0x3c] sm:$0xff]
      %v1280 = vld [vmem:[#allocation2 + $0x44] sm:$0xff]
      %v1281 = vld [vmem:[#allocation2 + $0x4c] sm:$0xff]
      %v1282 = vld [vmem:[#allocation2 + $0x54] sm:$0xff]
      %v1283 = vld [vmem:[#allocation2 + $0x5c] sm:$0xff]
      %v1284 = vld [vmem:[#allocation2 + $0x64] sm:$0xff]
      %v1285 = vld [vmem:[#allocation2 + $0x6c] sm:$0xff]
      %v1286 = vld [vmem:[#allocation2 + $0x74] sm:$0xff]
      %v1287 = vld [vmem:[#allocation2 + $0x7c] sm:$0xff]
      %v1288 = vld [vmem:[#allocation2 + $0x84] sm:$0xff]
      %v1289 = vld [vmem:[#allocation2 + $0x8c] sm:$0xff]
      %v1290 = vld [vmem:[#allocation2 + $0x94] sm:$0xff]
      %v1291 = vld [vmem:[#allocation2 + $0x9c] sm:$0xff]
      %v1292 = vld [vmem:[#allocation2 + $0xa4] sm:$0xff]
      %v1293 = vld [vmem:[#allocation2 + $0xac] sm:$0xff]
      %v1294 = vld [vmem:[#allocation2 + $0xb4] sm:$0xff]
      %v1295 = vld [vmem:[#allocation2 + $0xbc] sm:$0xff]
      %v1296 = vld [vmem:[#allocation2 + $0xc4] sm:$0xff]
      %v1297 = vld [vmem:[#allocation2 + $0xcc] sm:$0xff]
      %v1298 = vld [vmem:[#allocation2 + $0xd4] sm:$0xff]
      %v1299 = vld [vmem:[#allocation2 + $0xdc] sm:$0xff]
      %v1300 = vld [vmem:[#allocation2 + $0xe4] sm:$0xff]
      %v1301 = vld [vmem:[#allocation2 + $0xec] sm:$0xff]
      %v1302 = vld [vmem:[#allocation2 + $0xf4] sm:$0xff]
      %v1303 = vld [vmem:[#allocation2 + $0xfc] sm:$0xff]
      %vm1304 = vcmp.ge.s32.totalorder %v568, 0
      %vm1305 = vcmp.ge.s32.totalorder %v569, 0
      %vm1306 = vcmp.ge.s32.totalorder %v570, 0
      %vm1307 = vcmp.ge.s32.totalorder %v571, 0
      %vm1308 = vcmp.ge.s32.totalorder %v572, 0
      %vm1309 = vcmp.ge.s32.totalorder %v573, 0
      %vm1310 = vcmp.ge.s32.totalorder %v574, 0
      %vm1311 = vcmp.ge.s32.totalorder %v575, 0
      %vm1312 = vcmp.ge.s32.totalorder %v576, 0
      %vm1313 = vcmp.ge.s32.totalorder %v577, 0
      %vm1314 = vcmp.ge.s32.totalorder %v578, 0
      %vm1315 = vcmp.ge.s32.totalorder %v579, 0
      %vm1316 = vcmp.ge.s32.totalorder %v580, 0
      %vm1317 = vcmp.ge.s32.totalorder %v581, 0
      %vm1318 = vcmp.ge.s32.totalorder %v582, 0
      %vm1319 = vcmp.ge.s32.totalorder %v583, 0
      %vm1320 = vcmp.ge.s32.totalorder %v584, 0
      %vm1321 = vcmp.ge.s32.totalorder %v585, 0
      %vm1322 = vcmp.ge.s32.totalorder %v586, 0
      %vm1323 = vcmp.ge.s32.totalorder %v587, 0
      %vm1324 = vcmp.ge.s32.totalorder %v588, 0
      %vm1325 = vcmp.ge.s32.totalorder %v589, 0
      %vm1326 = vcmp.ge.s32.totalorder %v590, 0
      %vm1327 = vcmp.ge.s32.totalorder %v591, 0
      %vm1328 = vcmp.ge.s32.totalorder %v592, 0
      %vm1329 = vcmp.ge.s32.totalorder %v593, 0
      %vm1330 = vcmp.ge.s32.totalorder %v594, 0
      %vm1331 = vcmp.ge.s32.totalorder %v595, 0
      %vm1332 = vcmp.ge.s32.totalorder %v596, 0
      %vm1333 = vcmp.ge.s32.totalorder %v597, 0
      %vm1334 = vcmp.ge.s32.totalorder %v598, 0
      %vm1335 = vcmp.ge.s32.totalorder %v599, 0
      %vm1336 = vcmp.lt.s32.totalorder %v568, 15
      %vm1337 = vcmp.lt.s32.totalorder %v569, 15
      %vm1338 = vcmp.lt.s32.totalorder %v570, 15
      %vm1339 = vcmp.lt.s32.totalorder %v571, 15
      %vm1340 = vcmp.lt.s32.totalorder %v572, 15
      %vm1341 = vcmp.lt.s32.totalorder %v573, 15
      %vm1342 = vcmp.lt.s32.totalorder %v574, 15
      %vm1343 = vcmp.lt.s32.totalorder %v575, 15
      %vm1344 = vcmp.lt.s32.totalorder %v576, 15
      %vm1345 = vcmp.lt.s32.totalorder %v577, 15
      %vm1346 = vcmp.lt.s32.totalorder %v578, 15
      %vm1347 = vcmp.lt.s32.totalorder %v579, 15
      %vm1348 = vcmp.lt.s32.totalorder %v580, 15
      %vm1349 = vcmp.lt.s32.totalorder %v581, 15
      %vm1350 = vcmp.lt.s32.totalorder %v582, 15
      %vm1351 = vcmp.lt.s32.totalorder %v583, 15
      %vm1352 = vcmp.lt.s32.totalorder %v584, 15
      %vm1353 = vcmp.lt.s32.totalorder %v585, 15
      %vm1354 = vcmp.lt.s32.totalorder %v586, 15
      %vm1355 = vcmp.lt.s32.totalorder %v587, 15
      %vm1356 = vcmp.lt.s32.totalorder %v588, 15
      %vm1357 = vcmp.lt.s32.totalorder %v589, 15
      %vm1358 = vcmp.lt.s32.totalorder %v590, 15
      %vm1359 = vcmp.lt.s32.totalorder %v591, 15
      %vm1360 = vcmp.lt.s32.totalorder %v592, 15
      %vm1361 = vcmp.lt.s32.totalorder %v593, 15
      %vm1362 = vcmp.lt.s32.totalorder %v594, 15
      %vm1363 = vcmp.lt.s32.totalorder %v595, 15
      %vm1364 = vcmp.lt.s32.totalorder %v596, 15
      %vm1365 = vcmp.lt.s32.totalorder %v597, 15
      %vm1366 = vcmp.lt.s32.totalorder %v598, 15
      %vm1367 = vcmp.lt.s32.totalorder %v599, 15
      %vm1368 = vmand %vm1304, %vm1336
      %vm1369 = vmand %vm1305, %vm1337
      %vm1370 = vmand %vm1306, %vm1338
      %vm1371 = vmand %vm1307, %vm1339
      %vm1372 = vmand %vm1308, %vm1340
      %vm1373 = vmand %vm1309, %vm1341
      %vm1374 = vmand %vm1310, %vm1342
      %vm1375 = vmand %vm1311, %vm1343
      %vm1376 = vmand %vm1312, %vm1344
      %vm1377 = vmand %vm1313, %vm1345
      %vm1378 = vmand %vm1314, %vm1346
      %vm1379 = vmand %vm1315, %vm1347
      %vm1380 = vmand %vm1316, %vm1348
      %vm1381 = vmand %vm1317, %vm1349
      %vm1382 = vmand %vm1318, %vm1350
      %vm1383 = vmand %vm1319, %vm1351
      %vm1384 = vmand %vm1320, %vm1352
      %vm1385 = vmand %vm1321, %vm1353
      %vm1386 = vmand %vm1322, %vm1354
      %vm1387 = vmand %vm1323, %vm1355
      %vm1388 = vmand %vm1324, %vm1356
      %vm1389 = vmand %vm1325, %vm1357
      %vm1390 = vmand %vm1326, %vm1358
      %vm1391 = vmand %vm1327, %vm1359
      %vm1392 = vmand %vm1328, %vm1360
      %vm1393 = vmand %vm1329, %vm1361
      %vm1394 = vmand %vm1330, %vm1362
      %vm1395 = vmand %vm1331, %vm1363
      %vm1396 = vmand %vm1332, %vm1364
      %vm1397 = vmand %vm1333, %vm1365
      %vm1398 = vmand %vm1334, %vm1366
      %vm1399 = vmand %vm1335, %vm1367
      %v1400 = vsel %vm1368, %v1272, 0.0
      %v1401 = vsel %vm1369, %v1273, 0.0
      %v1402 = vsel %vm1370, %v1274, 0.0
      %v1403 = vsel %vm1371, %v1275, 0.0
      %v1404 = vsel %vm1372, %v1276, 0.0
      %v1405 = vsel %vm1373, %v1277, 0.0
      %v1406 = vsel %vm1374, %v1278, 0.0
      %v1407 = vsel %vm1375, %v1279, 0.0
      %v1408 = vsel %vm1376, %v1280, 0.0
      %v1409 = vsel %vm1377, %v1281, 0.0
      %v1410 = vsel %vm1378, %v1282, 0.0
      %v1411 = vsel %vm1379, %v1283, 0.0
      %v1412 = vsel %vm1380, %v1284, 0.0
      %v1413 = vsel %vm1381, %v1285, 0.0
      %v1414 = vsel %vm1382, %v1286, 0.0
      %v1415 = vsel %vm1383, %v1287, 0.0
      %v1416 = vsel %vm1384, %v1288, 0.0
      %v1417 = vsel %vm1385, %v1289, 0.0
      %v1418 = vsel %vm1386, %v1290, 0.0
      %v1419 = vsel %vm1387, %v1291, 0.0
      %v1420 = vsel %vm1388, %v1292, 0.0
      %v1421 = vsel %vm1389, %v1293, 0.0
      %v1422 = vsel %vm1390, %v1294, 0.0
      %v1423 = vsel %vm1391, %v1295, 0.0
      %v1424 = vsel %vm1392, %v1296, 0.0
      %v1425 = vsel %vm1393, %v1297, 0.0
      %v1426 = vsel %vm1394, %v1298, 0.0
      %v1427 = vsel %vm1395, %v1299, 0.0
      %v1428 = vsel %vm1396, %v1300, 0.0
      %v1429 = vsel %vm1397, %v1301, 0.0
      %v1430 = vsel %vm1398, %v1302, 0.0
      %v1431 = vsel %vm1399, %v1303, 0.0
      %v1432 = vmul.f32 %v1400, 0.24197145
      %v1433 = vmul.f32 %v1401, 0.24197145
      %v1434 = vmul.f32 %v1402, 0.24197145
      %v1435 = vmul.f32 %v1403, 0.24197145
      %v1436 = vmul.f32 %v1404, 0.24197145
      %v1437 = vmul.f32 %v1405, 0.24197145
      %v1438 = vmul.f32 %v1406, 0.24197145
      %v1439 = vmul.f32 %v1407, 0.24197145
      %v1440 = vmul.f32 %v1408, 0.24197145
      %v1441 = vmul.f32 %v1409, 0.24197145
      %v1442 = vmul.f32 %v1410, 0.24197145
      %v1443 = vmul.f32 %v1411, 0.24197145
      %v1444 = vmul.f32 %v1412, 0.24197145
      %v1445 = vmul.f32 %v1413, 0.24197145
      %v1446 = vmul.f32 %v1414, 0.24197145
      %v1447 = vmul.f32 %v1415, 0.24197145
      %v1448 = vmul.f32 %v1416, 0.24197145
      %v1449 = vmul.f32 %v1417, 0.24197145
      %v1450 = vmul.f32 %v1418, 0.24197145
      %v1451 = vmul.f32 %v1419, 0.24197145
      %v1452 = vmul.f32 %v1420, 0.24197145
      %v1453 = vmul.f32 %v1421, 0.24197145
      %v1454 = vmul.f32 %v1422, 0.24197145
      %v1455 = vmul.f32 %v1423, 0.24197145
      %v1456 = vmul.f32 %v1424, 0.24197145
      %v1457 = vmul.f32 %v1425, 0.24197145
      %v1458 = vmul.f32 %v1426, 0.24197145
      %v1459 = vmul.f32 %v1427, 0.24197145
      %v1460 = vmul.f32 %v1428, 0.24197145
      %v1461 = vmul.f32 %v1429, 0.24197145
      %v1462 = vmul.f32 %v1430, 0.24197145
      %v1463 = vmul.f32 %v1431, 0.24197145
      %v1464 = vadd.f32 %v1240, %v1432
      %v1465 = vadd.f32 %v1241, %v1433
      %v1466 = vadd.f32 %v1242, %v1434
      %v1467 = vadd.f32 %v1243, %v1435
      %v1468 = vadd.f32 %v1244, %v1436
      %v1469 = vadd.f32 %v1245, %v1437
      %v1470 = vadd.f32 %v1246, %v1438
      %v1471 = vadd.f32 %v1247, %v1439
      %v1472 = vadd.f32 %v1248, %v1440
      %v1473 = vadd.f32 %v1249, %v1441
      %v1474 = vadd.f32 %v1250, %v1442
      %v1475 = vadd.f32 %v1251, %v1443
      %v1476 = vadd.f32 %v1252, %v1444
      %v1477 = vadd.f32 %v1253, %v1445
      %v1478 = vadd.f32 %v1254, %v1446
      %v1479 = vadd.f32 %v1255, %v1447
      %v1480 = vadd.f32 %v1256, %v1448
      %v1481 = vadd.f32 %v1257, %v1449
      %v1482 = vadd.f32 %v1258, %v1450
      %v1483 = vadd.f32 %v1259, %v1451
      %v1484 = vadd.f32 %v1260, %v1452
      %v1485 = vadd.f32 %v1261, %v1453
      %v1486 = vadd.f32 %v1262, %v1454
      %v1487 = vadd.f32 %v1263, %v1455
      %v1488 = vadd.f32 %v1264, %v1456
      %v1489 = vadd.f32 %v1265, %v1457
      %v1490 = vadd.f32 %v1266, %v1458
      %v1491 = vadd.f32 %v1267, %v1459
      %v1492 = vadd.f32 %v1268, %v1460
      %v1493 = vadd.f32 %v1269, %v1461
      %v1494 = vadd.f32 %v1270, %v1462
      %v1495 = vadd.f32 %v1271, %v1463
      %v1496 = vld [vmem:[#allocation2 + $0x5] sm:$0xff]
      %v1497 = vld [vmem:[#allocation2 + $0xd] sm:$0xff]
      %v1498 = vld [vmem:[#allocation2 + $0x15] sm:$0xff]
      %v1499 = vld [vmem:[#allocation2 + $0x1d] sm:$0xff]
      %v1500 = vld [vmem:[#allocation2 + $0x25] sm:$0xff]
      %v1501 = vld [vmem:[#allocation2 + $0x2d] sm:$0xff]
      %v1502 = vld [vmem:[#allocation2 + $0x35] sm:$0xff]
      %v1503 = vld [vmem:[#allocation2 + $0x3d] sm:$0xff]
      %v1504 = vld [vmem:[#allocation2 + $0x45] sm:$0xff]
      %v1505 = vld [vmem:[#allocation2 + $0x4d] sm:$0xff]
      %v1506 = vld [vmem:[#allocation2 + $0x55] sm:$0xff]
      %v1507 = vld [vmem:[#allocation2 + $0x5d] sm:$0xff]
      %v1508 = vld [vmem:[#allocation2 + $0x65] sm:$0xff]
      %v1509 = vld [vmem:[#allocation2 + $0x6d] sm:$0xff]
      %v1510 = vld [vmem:[#allocation2 + $0x75] sm:$0xff]
      %v1511 = vld [vmem:[#allocation2 + $0x7d] sm:$0xff]
      %v1512 = vld [vmem:[#allocation2 + $0x85] sm:$0xff]
      %v1513 = vld [vmem:[#allocation2 + $0x8d] sm:$0xff]
      %v1514 = vld [vmem:[#allocation2 + $0x95] sm:$0xff]
      %v1515 = vld [vmem:[#allocation2 + $0x9d] sm:$0xff]
      %v1516 = vld [vmem:[#allocation2 + $0xa5] sm:$0xff]
      %v1517 = vld [vmem:[#allocation2 + $0xad] sm:$0xff]
      %v1518 = vld [vmem:[#allocation2 + $0xb5] sm:$0xff]
      %v1519 = vld [vmem:[#allocation2 + $0xbd] sm:$0xff]
      %v1520 = vld [vmem:[#allocation2 + $0xc5] sm:$0xff]
      %v1521 = vld [vmem:[#allocation2 + $0xcd] sm:$0xff]
      %v1522 = vld [vmem:[#allocation2 + $0xd5] sm:$0xff]
      %v1523 = vld [vmem:[#allocation2 + $0xdd] sm:$0xff]
      %v1524 = vld [vmem:[#allocation2 + $0xe5] sm:$0xff]
      %v1525 = vld [vmem:[#allocation2 + $0xed] sm:$0xff]
      %v1526 = vld [vmem:[#allocation2 + $0xf5] sm:$0xff]
      %v1527 = vld [vmem:[#allocation2 + $0xfd] sm:$0xff]
      %vm1528 = vcmp.lt.s32.totalorder %v568, 14
      %vm1529 = vcmp.lt.s32.totalorder %v569, 14
      %vm1530 = vcmp.lt.s32.totalorder %v570, 14
      %vm1531 = vcmp.lt.s32.totalorder %v571, 14
      %vm1532 = vcmp.lt.s32.totalorder %v572, 14
      %vm1533 = vcmp.lt.s32.totalorder %v573, 14
      %vm1534 = vcmp.lt.s32.totalorder %v574, 14
      %vm1535 = vcmp.lt.s32.totalorder %v575, 14
      %vm1536 = vcmp.lt.s32.totalorder %v576, 14
      %vm1537 = vcmp.lt.s32.totalorder %v577, 14
      %vm1538 = vcmp.lt.s32.totalorder %v578, 14
      %vm1539 = vcmp.lt.s32.totalorder %v579, 14
      %vm1540 = vcmp.lt.s32.totalorder %v580, 14
      %vm1541 = vcmp.lt.s32.totalorder %v581, 14
      %vm1542 = vcmp.lt.s32.totalorder %v582, 14
      %vm1543 = vcmp.lt.s32.totalorder %v583, 14
      %vm1544 = vcmp.lt.s32.totalorder %v584, 14
      %vm1545 = vcmp.lt.s32.totalorder %v585, 14
      %vm1546 = vcmp.lt.s32.totalorder %v586, 14
      %vm1547 = vcmp.lt.s32.totalorder %v587, 14
      %vm1548 = vcmp.lt.s32.totalorder %v588, 14
      %vm1549 = vcmp.lt.s32.totalorder %v589, 14
      %vm1550 = vcmp.lt.s32.totalorder %v590, 14
      %vm1551 = vcmp.lt.s32.totalorder %v591, 14
      %vm1552 = vcmp.lt.s32.totalorder %v592, 14
      %vm1553 = vcmp.lt.s32.totalorder %v593, 14
      %vm1554 = vcmp.lt.s32.totalorder %v594, 14
      %vm1555 = vcmp.lt.s32.totalorder %v595, 14
      %vm1556 = vcmp.lt.s32.totalorder %v596, 14
      %vm1557 = vcmp.lt.s32.totalorder %v597, 14
      %vm1558 = vcmp.lt.s32.totalorder %v598, 14
      %vm1559 = vcmp.lt.s32.totalorder %v599, 14
      %vm1560 = vmand %vm1304, %vm1528
      %vm1561 = vmand %vm1305, %vm1529
      %vm1562 = vmand %vm1306, %vm1530
      %vm1563 = vmand %vm1307, %vm1531
      %vm1564 = vmand %vm1308, %vm1532
      %vm1565 = vmand %vm1309, %vm1533
      %vm1566 = vmand %vm1310, %vm1534
      %vm1567 = vmand %vm1311, %vm1535
      %vm1568 = vmand %vm1312, %vm1536
      %vm1569 = vmand %vm1313, %vm1537
      %vm1570 = vmand %vm1314, %vm1538
      %vm1571 = vmand %vm1315, %vm1539
      %vm1572 = vmand %vm1316, %vm1540
      %vm1573 = vmand %vm1317, %vm1541
      %vm1574 = vmand %vm1318, %vm1542
      %vm1575 = vmand %vm1319, %vm1543
      %vm1576 = vmand %vm1320, %vm1544
      %vm1577 = vmand %vm1321, %vm1545
      %vm1578 = vmand %vm1322, %vm1546
      %vm1579 = vmand %vm1323, %vm1547
      %vm1580 = vmand %vm1324, %vm1548
      %vm1581 = vmand %vm1325, %vm1549
      %vm1582 = vmand %vm1326, %vm1550
      %vm1583 = vmand %vm1327, %vm1551
      %vm1584 = vmand %vm1328, %vm1552
      %vm1585 = vmand %vm1329, %vm1553
      %vm1586 = vmand %vm1330, %vm1554
      %vm1587 = vmand %vm1331, %vm1555
      %vm1588 = vmand %vm1332, %vm1556
      %vm1589 = vmand %vm1333, %vm1557
      %vm1590 = vmand %vm1334, %vm1558
      %vm1591 = vmand %vm1335, %vm1559
      %v1592 = vsel %vm1560, %v1496, 0.0
      %v1593 = vsel %vm1561, %v1497, 0.0
      %v1594 = vsel %vm1562, %v1498, 0.0
      %v1595 = vsel %vm1563, %v1499, 0.0
      %v1596 = vsel %vm1564, %v1500, 0.0
      %v1597 = vsel %vm1565, %v1501, 0.0
      %v1598 = vsel %vm1566, %v1502, 0.0
      %v1599 = vsel %vm1567, %v1503, 0.0
      %v1600 = vsel %vm1568, %v1504, 0.0
      %v1601 = vsel %vm1569, %v1505, 0.0
      %v1602 = vsel %vm1570, %v1506, 0.0
      %v1603 = vsel %vm1571, %v1507, 0.0
      %v1604 = vsel %vm1572, %v1508, 0.0
      %v1605 = vsel %vm1573, %v1509, 0.0
      %v1606 = vsel %vm1574, %v1510, 0.0
      %v1607 = vsel %vm1575, %v1511, 0.0
      %v1608 = vsel %vm1576, %v1512, 0.0
      %v1609 = vsel %vm1577, %v1513, 0.0
      %v1610 = vsel %vm1578, %v1514, 0.0
      %v1611 = vsel %vm1579, %v1515, 0.0
      %v1612 = vsel %vm1580, %v1516, 0.0
      %v1613 = vsel %vm1581, %v1517, 0.0
      %v1614 = vsel %vm1582, %v1518, 0.0
      %v1615 = vsel %vm1583, %v1519, 0.0
      %v1616 = vsel %vm1584, %v1520, 0.0
      %v1617 = vsel %vm1585, %v1521, 0.0
      %v1618 = vsel %vm1586, %v1522, 0.0
      %v1619 = vsel %vm1587, %v1523, 0.0
      %v1620 = vsel %vm1588, %v1524, 0.0
      %v1621 = vsel %vm1589, %v1525, 0.0
      %v1622 = vsel %vm1590, %v1526, 0.0
      %v1623 = vsel %vm1591, %v1527, 0.0
      %v1624 = vmul.f32 %v1592, 0.053991128
      %v1625 = vmul.f32 %v1593, 0.053991128
      %v1626 = vmul.f32 %v1594, 0.053991128
      %v1627 = vmul.f32 %v1595, 0.053991128
      %v1628 = vmul.f32 %v1596, 0.053991128
      %v1629 = vmul.f32 %v1597, 0.053991128
      %v1630 = vmul.f32 %v1598, 0.053991128
      %v1631 = vmul.f32 %v1599, 0.053991128
      %v1632 = vmul.f32 %v1600, 0.053991128
      %v1633 = vmul.f32 %v1601, 0.053991128
      %v1634 = vmul.f32 %v1602, 0.053991128
      %v1635 = vmul.f32 %v1603, 0.053991128
      %v1636 = vmul.f32 %v1604, 0.053991128
      %v1637 = vmul.f32 %v1605, 0.053991128
      %v1638 = vmul.f32 %v1606, 0.053991128
      %v1639 = vmul.f32 %v1607, 0.053991128
      %v1640 = vmul.f32 %v1608, 0.053991128
      %v1641 = vmul.f32 %v1609, 0.053991128
      %v1642 = vmul.f32 %v1610, 0.053991128
      %v1643 = vmul.f32 %v1611, 0.053991128
      %v1644 = vmul.f32 %v1612, 0.053991128
      %v1645 = vmul.f32 %v1613, 0.053991128
      %v1646 = vmul.f32 %v1614, 0.053991128
      %v1647 = vmul.f32 %v1615, 0.053991128
      %v1648 = vmul.f32 %v1616, 0.053991128
      %v1649 = vmul.f32 %v1617, 0.053991128
      %v1650 = vmul.f32 %v1618, 0.053991128
      %v1651 = vmul.f32 %v1619, 0.053991128
      %v1652 = vmul.f32 %v1620, 0.053991128
      %v1653 = vmul.f32 %v1621, 0.053991128
      %v1654 = vmul.f32 %v1622, 0.053991128
      %v1655 = vmul.f32 %v1623, 0.053991128
      %v1656 = vadd.f32 %v1464, %v1624
      %v1657 = vadd.f32 %v1465, %v1625
      %v1658 = vadd.f32 %v1466, %v1626
      %v1659 = vadd.f32 %v1467, %v1627
      %v1660 = vadd.f32 %v1468, %v1628
      %v1661 = vadd.f32 %v1469, %v1629
      %v1662 = vadd.f32 %v1470, %v1630
      %v1663 = vadd.f32 %v1471, %v1631
      %v1664 = vadd.f32 %v1472, %v1632
      %v1665 = vadd.f32 %v1473, %v1633
      %v1666 = vadd.f32 %v1474, %v1634
      %v1667 = vadd.f32 %v1475, %v1635
      %v1668 = vadd.f32 %v1476, %v1636
      %v1669 = vadd.f32 %v1477, %v1637
      %v1670 = vadd.f32 %v1478, %v1638
      %v1671 = vadd.f32 %v1479, %v1639
      %v1672 = vadd.f32 %v1480, %v1640
      %v1673 = vadd.f32 %v1481, %v1641
      %v1674 = vadd.f32 %v1482, %v1642
      %v1675 = vadd.f32 %v1483, %v1643
      %v1676 = vadd.f32 %v1484, %v1644
      %v1677 = vadd.f32 %v1485, %v1645
      %v1678 = vadd.f32 %v1486, %v1646
      %v1679 = vadd.f32 %v1487, %v1647
      %v1680 = vadd.f32 %v1488, %v1648
      %v1681 = vadd.f32 %v1489, %v1649
      %v1682 = vadd.f32 %v1490, %v1650
      %v1683 = vadd.f32 %v1491, %v1651
      %v1684 = vadd.f32 %v1492, %v1652
      %v1685 = vadd.f32 %v1493, %v1653
      %v1686 = vadd.f32 %v1494, %v1654
      %v1687 = vadd.f32 %v1495, %v1655
      %v1688 = vld [vmem:[#allocation2 + $0x6] sm:$0xff]
      %v1689 = vld [vmem:[#allocation2 + $0xe] sm:$0xff]
      %v1690 = vld [vmem:[#allocation2 + $0x16] sm:$0xff]
      %v1691 = vld [vmem:[#allocation2 + $0x1e] sm:$0xff]
      %v1692 = vld [vmem:[#allocation2 + $0x26] sm:$0xff]
      %v1693 = vld [vmem:[#allocation2 + $0x2e] sm:$0xff]
      %v1694 = vld [vmem:[#allocation2 + $0x36] sm:$0xff]
      %v1695 = vld [vmem:[#allocation2 + $0x3e] sm:$0xff]
      %v1696 = vld [vmem:[#allocation2 + $0x46] sm:$0xff]
      %v1697 = vld [vmem:[#allocation2 + $0x4e] sm:$0xff]
      %v1698 = vld [vmem:[#allocation2 + $0x56] sm:$0xff]
      %v1699 = vld [vmem:[#allocation2 + $0x5e] sm:$0xff]
      %v1700 = vld [vmem:[#allocation2 + $0x66] sm:$0xff]
      %v1701 = vld [vmem:[#allocation2 + $0x6e] sm:$0xff]
      %v1702 = vld [vmem:[#allocation2 + $0x76] sm:$0xff]
      %v1703 = vld [vmem:[#allocation2 + $0x7e] sm:$0xff]
      %v1704 = vld [vmem:[#allocation2 + $0x86] sm:$0xff]
      %v1705 = vld [vmem:[#allocation2 + $0x8e] sm:$0xff]
      %v1706 = vld [vmem:[#allocation2 + $0x96] sm:$0xff]
      %v1707 = vld [vmem:[#allocation2 + $0x9e] sm:$0xff]
      %v1708 = vld [vmem:[#allocation2 + $0xa6] sm:$0xff]
      %v1709 = vld [vmem:[#allocation2 + $0xae] sm:$0xff]
      %v1710 = vld [vmem:[#allocation2 + $0xb6] sm:$0xff]
      %v1711 = vld [vmem:[#allocation2 + $0xbe] sm:$0xff]
      %v1712 = vld [vmem:[#allocation2 + $0xc6] sm:$0xff]
      %v1713 = vld [vmem:[#allocation2 + $0xce] sm:$0xff]
      %v1714 = vld [vmem:[#allocation2 + $0xd6] sm:$0xff]
      %v1715 = vld [vmem:[#allocation2 + $0xde] sm:$0xff]
      %v1716 = vld [vmem:[#allocation2 + $0xe6] sm:$0xff]
      %v1717 = vld [vmem:[#allocation2 + $0xee] sm:$0xff]
      %v1718 = vld [vmem:[#allocation2 + $0xf6] sm:$0xff]
      %v1719 = vld [vmem:[#allocation2 + $0xfe] sm:$0xff]
      %vm1720 = vcmp.lt.s32.totalorder %v568, 13
      %vm1721 = vcmp.lt.s32.totalorder %v569, 13
      %vm1722 = vcmp.lt.s32.totalorder %v570, 13
      %vm1723 = vcmp.lt.s32.totalorder %v571, 13
      %vm1724 = vcmp.lt.s32.totalorder %v572, 13
      %vm1725 = vcmp.lt.s32.totalorder %v573, 13
      %vm1726 = vcmp.lt.s32.totalorder %v574, 13
      %vm1727 = vcmp.lt.s32.totalorder %v575, 13
      %vm1728 = vcmp.lt.s32.totalorder %v576, 13
      %vm1729 = vcmp.lt.s32.totalorder %v577, 13
      %vm1730 = vcmp.lt.s32.totalorder %v578, 13
      %vm1731 = vcmp.lt.s32.totalorder %v579, 13
      %vm1732 = vcmp.lt.s32.totalorder %v580, 13
      %vm1733 = vcmp.lt.s32.totalorder %v581, 13
      %vm1734 = vcmp.lt.s32.totalorder %v582, 13
      %vm1735 = vcmp.lt.s32.totalorder %v583, 13
      %vm1736 = vcmp.lt.s32.totalorder %v584, 13
      %vm1737 = vcmp.lt.s32.totalorder %v585, 13
      %vm1738 = vcmp.lt.s32.totalorder %v586, 13
      %vm1739 = vcmp.lt.s32.totalorder %v587, 13
      %vm1740 = vcmp.lt.s32.totalorder %v588, 13
      %vm1741 = vcmp.lt.s32.totalorder %v589, 13
      %vm1742 = vcmp.lt.s32.totalorder %v590, 13
      %vm1743 = vcmp.lt.s32.totalorder %v591, 13
      %vm1744 = vcmp.lt.s32.totalorder %v592, 13
      %vm1745 = vcmp.lt.s32.totalorder %v593, 13
      %vm1746 = vcmp.lt.s32.totalorder %v594, 13
      %vm1747 = vcmp.lt.s32.totalorder %v595, 13
      %vm1748 = vcmp.lt.s32.totalorder %v596, 13
      %vm1749 = vcmp.lt.s32.totalorder %v597, 13
      %vm1750 = vcmp.lt.s32.totalorder %v598, 13
      %vm1751 = vcmp.lt.s32.totalorder %v599, 13
      %vm1752 = vmand %vm1304, %vm1720
      %vm1753 = vmand %vm1305, %vm1721
      %vm1754 = vmand %vm1306, %vm1722
      %vm1755 = vmand %vm1307, %vm1723
      %vm1756 = vmand %vm1308, %vm1724
      %vm1757 = vmand %vm1309, %vm1725
      %vm1758 = vmand %vm1310, %vm1726
      %vm1759 = vmand %vm1311, %vm1727
      %vm1760 = vmand %vm1312, %vm1728
      %vm1761 = vmand %vm1313, %vm1729
      %vm1762 = vmand %vm1314, %vm1730
      %vm1763 = vmand %vm1315, %vm1731
      %vm1764 = vmand %vm1316, %vm1732
      %vm1765 = vmand %vm1317, %vm1733
      %vm1766 = vmand %vm1318, %vm1734
      %vm1767 = vmand %vm1319, %vm1735
      %vm1768 = vmand %vm1320, %vm1736
      %vm1769 = vmand %vm1321, %vm1737
      %vm1770 = vmand %vm1322, %vm1738
      %vm1771 = vmand %vm1323, %vm1739
      %vm1772 = vmand %vm1324, %vm1740
      %vm1773 = vmand %vm1325, %vm1741
      %vm1774 = vmand %vm1326, %vm1742
      %vm1775 = vmand %vm1327, %vm1743
      %vm1776 = vmand %vm1328, %vm1744
      %vm1777 = vmand %vm1329, %vm1745
      %vm1778 = vmand %vm1330, %vm1746
      %vm1779 = vmand %vm1331, %vm1747
      %vm1780 = vmand %vm1332, %vm1748
      %vm1781 = vmand %vm1333, %vm1749
      %vm1782 = vmand %vm1334, %vm1750
      %vm1783 = vmand %vm1335, %vm1751
      %v1784 = vsel %vm1752, %v1688, 0.0
      %v1785 = vsel %vm1753, %v1689, 0.0
      %v1786 = vsel %vm1754, %v1690, 0.0
      %v1787 = vsel %vm1755, %v1691, 0.0
      %v1788 = vsel %vm1756, %v1692, 0.0
      %v1789 = vsel %vm1757, %v1693, 0.0
      %v1790 = vsel %vm1758, %v1694, 0.0
      %v1791 = vsel %vm1759, %v1695, 0.0
      %v1792 = vsel %vm1760, %v1696, 0.0
      %v1793 = vsel %vm1761, %v1697, 0.0
      %v1794 = vsel %vm1762, %v1698, 0.0
      %v1795 = vsel %vm1763, %v1699, 0.0
      %v1796 = vsel %vm1764, %v1700, 0.0
      %v1797 = vsel %vm1765, %v1701, 0.0
      %v1798 = vsel %vm1766, %v1702, 0.0
      %v1799 = vsel %vm1767, %v1703, 0.0
      %v1800 = vsel %vm1768, %v1704, 0.0
      %v1801 = vsel %vm1769, %v1705, 0.0
      %v1802 = vsel %vm1770, %v1706, 0.0
      %v1803 = vsel %vm1771, %v1707, 0.0
      %v1804 = vsel %vm1772, %v1708, 0.0
      %v1805 = vsel %vm1773, %v1709, 0.0
      %v1806 = vsel %vm1774, %v1710, 0.0
      %v1807 = vsel %vm1775, %v1711, 0.0
      %v1808 = vsel %vm1776, %v1712, 0.0
      %v1809 = vsel %vm1777, %v1713, 0.0
      %v1810 = vsel %vm1778, %v1714, 0.0
      %v1811 = vsel %vm1779, %v1715, 0.0
      %v1812 = vsel %vm1780, %v1716, 0.0
      %v1813 = vsel %vm1781, %v1717, 0.0
      %v1814 = vsel %vm1782, %v1718, 0.0
      %v1815 = vsel %vm1783, %v1719, 0.0
      %v1816 = vmul.f32 %v1784, 0.004565692
      %v1817 = vmul.f32 %v1785, 0.004565692
      %v1818 = vmul.f32 %v1786, 0.004565692
      %v1819 = vmul.f32 %v1787, 0.004565692
      %v1820 = vmul.f32 %v1788, 0.004565692
      %v1821 = vmul.f32 %v1789, 0.004565692
      %v1822 = vmul.f32 %v1790, 0.004565692
      %v1823 = vmul.f32 %v1791, 0.004565692
      %v1824 = vmul.f32 %v1792, 0.004565692
      %v1825 = vmul.f32 %v1793, 0.004565692
      %v1826 = vmul.f32 %v1794, 0.004565692
      %v1827 = vmul.f32 %v1795, 0.004565692
      %v1828 = vmul.f32 %v1796, 0.004565692
      %v1829 = vmul.f32 %v1797, 0.004565692
      %v1830 = vmul.f32 %v1798, 0.004565692
      %v1831 = vmul.f32 %v1799, 0.004565692
      %v1832 = vmul.f32 %v1800, 0.004565692
      %v1833 = vmul.f32 %v1801, 0.004565692
      %v1834 = vmul.f32 %v1802, 0.004565692
      %v1835 = vmul.f32 %v1803, 0.004565692
      %v1836 = vmul.f32 %v1804, 0.004565692
      %v1837 = vmul.f32 %v1805, 0.004565692
      %v1838 = vmul.f32 %v1806, 0.004565692
      %v1839 = vmul.f32 %v1807, 0.004565692
      %v1840 = vmul.f32 %v1808, 0.004565692
      %v1841 = vmul.f32 %v1809, 0.004565692
      %v1842 = vmul.f32 %v1810, 0.004565692
      %v1843 = vmul.f32 %v1811, 0.004565692
      %v1844 = vmul.f32 %v1812, 0.004565692
      %v1845 = vmul.f32 %v1813, 0.004565692
      %v1846 = vmul.f32 %v1814, 0.004565692
      %v1847 = vmul.f32 %v1815, 0.004565692
      %v1848 = vadd.f32 %v1656, %v1816
      %v1849 = vadd.f32 %v1657, %v1817
      %v1850 = vadd.f32 %v1658, %v1818
      %v1851 = vadd.f32 %v1659, %v1819
      %v1852 = vadd.f32 %v1660, %v1820
      %v1853 = vadd.f32 %v1661, %v1821
      %v1854 = vadd.f32 %v1662, %v1822
      %v1855 = vadd.f32 %v1663, %v1823
      %v1856 = vadd.f32 %v1664, %v1824
      %v1857 = vadd.f32 %v1665, %v1825
      %v1858 = vadd.f32 %v1666, %v1826
      %v1859 = vadd.f32 %v1667, %v1827
      %v1860 = vadd.f32 %v1668, %v1828
      %v1861 = vadd.f32 %v1669, %v1829
      %v1862 = vadd.f32 %v1670, %v1830
      %v1863 = vadd.f32 %v1671, %v1831
      %v1864 = vadd.f32 %v1672, %v1832
      %v1865 = vadd.f32 %v1673, %v1833
      %v1866 = vadd.f32 %v1674, %v1834
      %v1867 = vadd.f32 %v1675, %v1835
      %v1868 = vadd.f32 %v1676, %v1836
      %v1869 = vadd.f32 %v1677, %v1837
      %v1870 = vadd.f32 %v1678, %v1838
      %v1871 = vadd.f32 %v1679, %v1839
      %v1872 = vadd.f32 %v1680, %v1840
      %v1873 = vadd.f32 %v1681, %v1841
      %v1874 = vadd.f32 %v1682, %v1842
      %v1875 = vadd.f32 %v1683, %v1843
      %v1876 = vadd.f32 %v1684, %v1844
      %v1877 = vadd.f32 %v1685, %v1845
      %v1878 = vadd.f32 %v1686, %v1846
      %v1879 = vadd.f32 %v1687, %v1847
      %1880 = vst.msk [vmem:[#allocation3] sm:$0xff] %vm178, 0.0
      %1881 = vst.msk [vmem:[#allocation3 + $0x8] sm:$0xff] %vm178, 0.0
      %1882 = vst.msk [vmem:[#allocation3 + $0x10] sm:$0xff] %vm178, 0.0
      %1883 = vst.msk [vmem:[#allocation3 + $0x18] sm:$0xff] %vm178, 0.0
      %1884 = vst.msk [vmem:[#allocation3 + $0x20] sm:$0xff] %vm178, 0.0
      %1885 = vst.msk [vmem:[#allocation3 + $0x28] sm:$0xff] %vm178, 0.0
      %1886 = vst.msk [vmem:[#allocation3 + $0x130] sm:$0xff] %vm178, 0.0
      %1887 = vst.msk [vmem:[#allocation3 + $0x138] sm:$0xff] %vm178, 0.0
      %1888 = vst.msk [vmem:[#allocation3 + $0x140] sm:$0xff] %vm178, 0.0
      %1889 = vst.msk [vmem:[#allocation3 + $0x148] sm:$0xff] %vm178, 0.0
      %1890 = vst.msk [vmem:[#allocation3 + $0x150] sm:$0xff] %vm178, 0.0
      %1891 = vst.msk [vmem:[#allocation3 + $0x158] sm:$0xff] %vm178, 0.0
      %1892 = vst.msk [vmem:[#allocation3 + $0x30] sm:$0xff] %vm178, %v1848
      %1893 = vst.msk [vmem:[#allocation3 + $0x38] sm:$0xff] %vm178, %v1849
      %1894 = vst.msk [vmem:[#allocation3 + $0x40] sm:$0xff] %vm178, %v1850
      %1895 = vst.msk [vmem:[#allocation3 + $0x48] sm:$0xff] %vm178, %v1851
      %1896 = vst.msk [vmem:[#allocation3 + $0x50] sm:$0xff] %vm178, %v1852
      %1897 = vst.msk [vmem:[#allocation3 + $0x58] sm:$0xff] %vm178, %v1853
      %1898 = vst.msk [vmem:[#allocation3 + $0x60] sm:$0xff] %vm178, %v1854
      %1899 = vst.msk [vmem:[#allocation3 + $0x68] sm:$0xff] %vm178, %v1855
      %1900 = vst.msk [vmem:[#allocation3 + $0x70] sm:$0xff] %vm178, %v1856
      %1901 = vst.msk [vmem:[#allocation3 + $0x78] sm:$0xff] %vm178, %v1857
      %1902 = vst.msk [vmem:[#allocation3 + $0x80] sm:$0xff] %vm178, %v1858
      %1903 = vst.msk [vmem:[#allocation3 + $0x88] sm:$0xff] %vm178, %v1859
      %1904 = vst.msk [vmem:[#allocation3 + $0x90] sm:$0xff] %vm178, %v1860
      %1905 = vst.msk [vmem:[#allocation3 + $0x98] sm:$0xff] %vm178, %v1861
      %1906 = vst.msk [vmem:[#allocation3 + $0xa0] sm:$0xff] %vm178, %v1862
      %1907 = vst.msk [vmem:[#allocation3 + $0xa8] sm:$0xff] %vm178, %v1863
      %1908 = vst.msk [vmem:[#allocation3 + $0xb0] sm:$0xff] %vm178, %v1864
      %1909 = vst.msk [vmem:[#allocation3 + $0xb8] sm:$0xff] %vm178, %v1865
      %1910 = vst.msk [vmem:[#allocation3 + $0xc0] sm:$0xff] %vm178, %v1866
      %1911 = vst.msk [vmem:[#allocation3 + $0xc8] sm:$0xff] %vm178, %v1867
      %1912 = vst.msk [vmem:[#allocation3 + $0xd0] sm:$0xff] %vm178, %v1868
      %1913 = vst.msk [vmem:[#allocation3 + $0xd8] sm:$0xff] %vm178, %v1869
      %1914 = vst.msk [vmem:[#allocation3 + $0xe0] sm:$0xff] %vm178, %v1870
      %1915 = vst.msk [vmem:[#allocation3 + $0xe8] sm:$0xff] %vm178, %v1871
      %1916 = vst.msk [vmem:[#allocation3 + $0xf0] sm:$0xff] %vm178, %v1872
      %1917 = vst.msk [vmem:[#allocation3 + $0xf8] sm:$0xff] %vm178, %v1873
      %1918 = vst.msk [vmem:[#allocation3 + $0x100] sm:$0xff] %vm178, %v1874
      %1919 = vst.msk [vmem:[#allocation3 + $0x108] sm:$0xff] %vm178, %v1875
      %1920 = vst.msk [vmem:[#allocation3 + $0x110] sm:$0xff] %vm178, %v1876
      %1921 = vst.msk [vmem:[#allocation3 + $0x118] sm:$0xff] %vm178, %v1877
      %1922 = vst.msk [vmem:[#allocation3 + $0x120] sm:$0xff] %vm178, %v1878
      %1923 = vst.msk [vmem:[#allocation3 + $0x128] sm:$0xff] %vm178, %v1879
      %v1924 = vld [vmem:[#allocation3] sm:$0xff]
      %v1925 = vld [vmem:[#allocation3 + $0x8] sm:$0xff]
      %v1926 = vld [vmem:[#allocation3 + $0x10] sm:$0xff]
      %v1927 = vld [vmem:[#allocation3 + $0x18] sm:$0xff]
      %v1928 = vld [vmem:[#allocation3 + $0x20] sm:$0xff]
      %v1929 = vld [vmem:[#allocation3 + $0x28] sm:$0xff]
      %v1930 = vld [vmem:[#allocation3 + $0x30] sm:$0xff]
      %v1931 = vld [vmem:[#allocation3 + $0x38] sm:$0xff]
      %v1932 = vld [vmem:[#allocation3 + $0x40] sm:$0xff]
      %v1933 = vld [vmem:[#allocation3 + $0x48] sm:$0xff]
      %v1934 = vld [vmem:[#allocation3 + $0x50] sm:$0xff]
      %v1935 = vld [vmem:[#allocation3 + $0x58] sm:$0xff]
      %v1936 = vld [vmem:[#allocation3 + $0x60] sm:$0xff]
      %v1937 = vld [vmem:[#allocation3 + $0x68] sm:$0xff]
      %v1938 = vld [vmem:[#allocation3 + $0x70] sm:$0xff]
      %v1939 = vld [vmem:[#allocation3 + $0x78] sm:$0xff]
      %v1940 = vld [vmem:[#allocation3 + $0x80] sm:$0xff]
      %v1941 = vld [vmem:[#allocation3 + $0x88] sm:$0xff]
      %v1942 = vld [vmem:[#allocation3 + $0x90] sm:$0xff]
      %v1943 = vld [vmem:[#allocation3 + $0x98] sm:$0xff]
      %v1944 = vld [vmem:[#allocation3 + $0xa0] sm:$0xff]
      %v1945 = vld [vmem:[#allocation3 + $0xa8] sm:$0xff]
      %v1946 = vld [vmem:[#allocation3 + $0xb0] sm:$0xff]
      %v1947 = vld [vmem:[#allocation3 + $0xb8] sm:$0xff]
      %v1948 = vld [vmem:[#allocation3 + $0xc0] sm:$0xff]
      %v1949 = vld [vmem:[#allocation3 + $0xc8] sm:$0xff]
      %v1950 = vld [vmem:[#allocation3 + $0xd0] sm:$0xff]
      %v1951 = vld [vmem:[#allocation3 + $0xd8] sm:$0xff]
      %v1952 = vld [vmem:[#allocation3 + $0xe0] sm:$0xff]
      %v1953 = vld [vmem:[#allocation3 + $0xe8] sm:$0xff]
      %v1954 = vld [vmem:[#allocation3 + $0xf0] sm:$0xff]
      %v1955 = vld [vmem:[#allocation3 + $0xf8] sm:$0xff]
      %v1956 = vmul.f32 %v1924, 0.004565692
      %v1957 = vmul.f32 %v1925, 0.004565692
      %v1958 = vmul.f32 %v1926, 0.004565692
      %v1959 = vmul.f32 %v1927, 0.004565692
      %v1960 = vmul.f32 %v1928, 0.004565692
      %v1961 = vmul.f32 %v1929, 0.004565692
      %v1962 = vmul.f32 %v1930, 0.004565692
      %v1963 = vmul.f32 %v1931, 0.004565692
      %v1964 = vmul.f32 %v1932, 0.004565692
      %v1965 = vmul.f32 %v1933, 0.004565692
      %v1966 = vmul.f32 %v1934, 0.004565692
      %v1967 = vmul.f32 %v1935, 0.004565692
      %v1968 = vmul.f32 %v1936, 0.004565692
      %v1969 = vmul.f32 %v1937, 0.004565692
      %v1970 = vmul.f32 %v1938, 0.004565692
      %v1971 = vmul.f32 %v1939, 0.004565692
      %v1972 = vmul.f32 %v1940, 0.004565692
      %v1973 = vmul.f32 %v1941, 0.004565692
      %v1974 = vmul.f32 %v1942, 0.004565692
      %v1975 = vmul.f32 %v1943, 0.004565692
      %v1976 = vmul.f32 %v1944, 0.004565692
      %v1977 = vmul.f32 %v1945, 0.004565692
      %v1978 = vmul.f32 %v1946, 0.004565692
      %v1979 = vmul.f32 %v1947, 0.004565692
      %v1980 = vmul.f32 %v1948, 0.004565692
      %v1981 = vmul.f32 %v1949, 0.004565692
      %v1982 = vmul.f32 %v1950, 0.004565692
      %v1983 = vmul.f32 %v1951, 0.004565692
      %v1984 = vmul.f32 %v1952, 0.004565692
      %v1985 = vmul.f32 %v1953, 0.004565692
      %v1986 = vmul.f32 %v1954, 0.004565692
      %v1987 = vmul.f32 %v1955, 0.004565692
      %v1988 = vld [vmem:[#allocation3 + $0x100] sm:$0xff]
      %v1989 = vld [vmem:[#allocation3 + $0x108] sm:$0xff]
      %v1990 = vmul.f32 %v1926, 0.053991128
      %v1991 = vmul.f32 %v1927, 0.053991128
      %v1992 = vmul.f32 %v1928, 0.053991128
      %v1993 = vmul.f32 %v1929, 0.053991128
      %v1994 = vmul.f32 %v1930, 0.053991128
      %v1995 = vmul.f32 %v1931, 0.053991128
      %v1996 = vmul.f32 %v1932, 0.053991128
      %v1997 = vmul.f32 %v1933, 0.053991128
      %v1998 = vmul.f32 %v1934, 0.053991128
      %v1999 = vmul.f32 %v1935, 0.053991128
      %v2000 = vmul.f32 %v1936, 0.053991128
      %v2001 = vmul.f32 %v1937, 0.053991128
      %v2002 = vmul.f32 %v1938, 0.053991128
      %v2003 = vmul.f32 %v1939, 0.053991128
      %v2004 = vmul.f32 %v1940, 0.053991128
      %v2005 = vmul.f32 %v1941, 0.053991128
      %v2006 = vmul.f32 %v1942, 0.053991128
      %v2007 = vmul.f32 %v1943, 0.053991128
      %v2008 = vmul.f32 %v1944, 0.053991128
      %v2009 = vmul.f32 %v1945, 0.053991128
      %v2010 = vmul.f32 %v1946, 0.053991128
      %v2011 = vmul.f32 %v1947, 0.053991128
      %v2012 = vmul.f32 %v1948, 0.053991128
      %v2013 = vmul.f32 %v1949, 0.053991128
      %v2014 = vmul.f32 %v1950, 0.053991128
      %v2015 = vmul.f32 %v1951, 0.053991128
      %v2016 = vmul.f32 %v1952, 0.053991128
      %v2017 = vmul.f32 %v1953, 0.053991128
      %v2018 = vmul.f32 %v1954, 0.053991128
      %v2019 = vmul.f32 %v1955, 0.053991128
      %v2020 = vmul.f32 %v1988, 0.053991128
      %v2021 = vmul.f32 %v1989, 0.053991128
      %v2022 = vadd.f32 %v1956, %v1990
      %v2023 = vadd.f32 %v1957, %v1991
      %v2024 = vadd.f32 %v1958, %v1992
      %v2025 = vadd.f32 %v1959, %v1993
      %v2026 = vadd.f32 %v1960, %v1994
      %v2027 = vadd.f32 %v1961, %v1995
      %v2028 = vadd.f32 %v1962, %v1996
      %v2029 = vadd.f32 %v1963, %v1997
      %v2030 = vadd.f32 %v1964, %v1998
      %v2031 = vadd.f32 %v1965, %v1999
      %v2032 = vadd.f32 %v1966, %v2000
      %v2033 = vadd.f32 %v1967, %v2001
      %v2034 = vadd.f32 %v1968, %v2002
      %v2035 = vadd.f32 %v1969, %v2003
      %v2036 = vadd.f32 %v1970, %v2004
      %v2037 = vadd.f32 %v1971, %v2005
      %v2038 = vadd.f32 %v1972, %v2006
      %v2039 = vadd.f32 %v1973, %v2007
      %v2040 = vadd.f32 %v1974, %v2008
      %v2041 = vadd.f32 %v1975, %v2009
      %v2042 = vadd.f32 %v1976, %v2010
      %v2043 = vadd.f32 %v1977, %v2011
      %v2044 = vadd.f32 %v1978, %v2012
      %v2045 = vadd.f32 %v1979, %v2013
      %v2046 = vadd.f32 %v1980, %v2014
      %v2047 = vadd.f32 %v1981, %v2015
      %v2048 = vadd.f32 %v1982, %v2016
      %v2049 = vadd.f32 %v1983, %v2017
      %v2050 = vadd.f32 %v1984, %v2018
      %v2051 = vadd.f32 %v1985, %v2019
      %v2052 = vadd.f32 %v1986, %v2020
      %v2053 = vadd.f32 %v1987, %v2021
      %v2054 = vld [vmem:[#allocation3 + $0x110] sm:$0xff]
      %v2055 = vld [vmem:[#allocation3 + $0x118] sm:$0xff]
      %v2056 = vmul.f32 %v1928, 0.24197145
      %v2057 = vmul.f32 %v1929, 0.24197145
      %v2058 = vmul.f32 %v1930, 0.24197145
      %v2059 = vmul.f32 %v1931, 0.24197145
      %v2060 = vmul.f32 %v1932, 0.24197145
      %v2061 = vmul.f32 %v1933, 0.24197145
      %v2062 = vmul.f32 %v1934, 0.24197145
      %v2063 = vmul.f32 %v1935, 0.24197145
      %v2064 = vmul.f32 %v1936, 0.24197145
      %v2065 = vmul.f32 %v1937, 0.24197145
      %v2066 = vmul.f32 %v1938, 0.24197145
      %v2067 = vmul.f32 %v1939, 0.24197145
      %v2068 = vmul.f32 %v1940, 0.24197145
      %v2069 = vmul.f32 %v1941, 0.24197145
      %v2070 = vmul.f32 %v1942, 0.24197145
      %v2071 = vmul.f32 %v1943, 0.24197145
      %v2072 = vmul.f32 %v1944, 0.24197145
      %v2073 = vmul.f32 %v1945, 0.24197145
      %v2074 = vmul.f32 %v1946, 0.24197145
      %v2075 = vmul.f32 %v1947, 0.24197145
      %v2076 = vmul.f32 %v1948, 0.24197145
      %v2077 = vmul.f32 %v1949, 0.24197145
      %v2078 = vmul.f32 %v1950, 0.24197145
      %v2079 = vmul.f32 %v1951, 0.24197145
      %v2080 = vmul.f32 %v1952, 0.24197145
      %v2081 = vmul.f32 %v1953, 0.24197145
      %v2082 = vmul.f32 %v1954, 0.24197145
      %v2083 = vmul.f32 %v1955, 0.24197145
      %v2084 = vmul.f32 %v1988, 0.24197145
      %v2085 = vmul.f32 %v1989, 0.24197145
      %v2086 = vmul.f32 %v2054, 0.24197145
      %v2087 = vmul.f32 %v2055, 0.24197145
      %v2088 = vadd.f32 %v2022, %v2056
      %v2089 = vadd.f32 %v2023, %v2057
      %v2090 = vadd.f32 %v2024, %v2058
      %v2091 = vadd.f32 %v2025, %v2059
      %v2092 = vadd.f32 %v2026, %v2060
      %v2093 = vadd.f32 %v2027, %v2061
      %v2094 = vadd.f32 %v2028, %v2062
      %v2095 = vadd.f32 %v2029, %v2063
      %v2096 = vadd.f32 %v2030, %v2064
      %v2097 = vadd.f32 %v2031, %v2065
      %v2098 = vadd.f32 %v2032, %v2066
      %v2099 = vadd.f32 %v2033, %v2067
      %v2100 = vadd.f32 %v2034, %v2068
      %v2101 = vadd.f32 %v2035, %v2069
      %v2102 = vadd.f32 %v2036, %v2070
      %v2103 = vadd.f32 %v2037, %v2071
      %v2104 = vadd.f32 %v2038, %v2072
      %v2105 = vadd.f32 %v2039, %v2073
      %v2106 = vadd.f32 %v2040, %v2074
      %v2107 = vadd.f32 %v2041, %v2075
      %v2108 = vadd.f32 %v2042, %v2076
      %v2109 = vadd.f32 %v2043, %v2077
      %v2110 = vadd.f32 %v2044, %v2078
      %v2111 = vadd.f32 %v2045, %v2079
      %v2112 = vadd.f32 %v2046, %v2080
      %v2113 = vadd.f32 %v2047, %v2081
      %v2114 = vadd.f32 %v2048, %v2082
      %v2115 = vadd.f32 %v2049, %v2083
      %v2116 = vadd.f32 %v2050, %v2084
      %v2117 = vadd.f32 %v2051, %v2085
      %v2118 = vadd.f32 %v2052, %v2086
      %v2119 = vadd.f32 %v2053, %v2087
      %v2120 = vld [vmem:[#allocation3 + $0x120] sm:$0xff]
      %v2121 = vld [vmem:[#allocation3 + $0x128] sm:$0xff]
      %v2122 = vmul.f32 %v1930, 0.39894348
      %v2123 = vmul.f32 %v1931, 0.39894348
      %v2124 = vmul.f32 %v1932, 0.39894348
      %v2125 = vmul.f32 %v1933, 0.39894348
      %v2126 = vmul.f32 %v1934, 0.39894348
      %v2127 = vmul.f32 %v1935, 0.39894348
      %v2128 = vmul.f32 %v1936, 0.39894348
      %v2129 = vmul.f32 %v1937, 0.39894348
      %v2130 = vmul.f32 %v1938, 0.39894348
      %v2131 = vmul.f32 %v1939, 0.39894348
      %v2132 = vmul.f32 %v1940, 0.39894348
      %v2133 = vmul.f32 %v1941, 0.39894348
      %v2134 = vmul.f32 %v1942, 0.39894348
      %v2135 = vmul.f32 %v1943, 0.39894348
      %v2136 = vmul.f32 %v1944, 0.39894348
      %v2137 = vmul.f32 %v1945, 0.39894348
      %v2138 = vmul.f32 %v1946, 0.39894348
      %v2139 = vmul.f32 %v1947, 0.39894348
      %v2140 = vmul.f32 %v1948, 0.39894348
      %v2141 = vmul.f32 %v1949, 0.39894348
      %v2142 = vmul.f32 %v1950, 0.39894348
      %v2143 = vmul.f32 %v1951, 0.39894348
      %v2144 = vmul.f32 %v1952, 0.39894348
      %v2145 = vmul.f32 %v1953, 0.39894348
      %v2146 = vmul.f32 %v1954, 0.39894348
      %v2147 = vmul.f32 %v1955, 0.39894348
      %v2148 = vmul.f32 %v1988, 0.39894348
      %v2149 = vmul.f32 %v1989, 0.39894348
      %v2150 = vmul.f32 %v2054, 0.39894348
      %v2151 = vmul.f32 %v2055, 0.39894348
      %v2152 = vmul.f32 %v2120, 0.39894348
      %v2153 = vmul.f32 %v2121, 0.39894348
      %v2154 = vadd.f32 %v2088, %v2122
      %v2155 = vadd.f32 %v2089, %v2123
      %v2156 = vadd.f32 %v2090, %v2124
      %v2157 = vadd.f32 %v2091, %v2125
      %v2158 = vadd.f32 %v2092, %v2126
      %v2159 = vadd.f32 %v2093, %v2127
      %v2160 = vadd.f32 %v2094, %v2128
      %v2161 = vadd.f32 %v2095, %v2129
      %v2162 = vadd.f32 %v2096, %v2130
      %v2163 = vadd.f32 %v2097, %v2131
      %v2164 = vadd.f32 %v2098, %v2132
      %v2165 = vadd.f32 %v2099, %v2133
      %v2166 = vadd.f32 %v2100, %v2134
      %v2167 = vadd.f32 %v2101, %v2135
      %v2168 = vadd.f32 %v2102, %v2136
      %v2169 = vadd.f32 %v2103, %v2137
      %v2170 = vadd.f32 %v2104, %v2138
      %v2171 = vadd.f32 %v2105, %v2139
      %v2172 = vadd.f32 %v2106, %v2140
      %v2173 = vadd.f32 %v2107, %v2141
      %v2174 = vadd.f32 %v2108, %v2142
      %v2175 = vadd.f32 %v2109, %v2143
      %v2176 = vadd.f32 %v2110, %v2144
      %v2177 = vadd.f32 %v2111, %v2145
      %v2178 = vadd.f32 %v2112, %v2146
      %v2179 = vadd.f32 %v2113, %v2147
      %v2180 = vadd.f32 %v2114, %v2148
      %v2181 = vadd.f32 %v2115, %v2149
      %v2182 = vadd.f32 %v2116, %v2150
      %v2183 = vadd.f32 %v2117, %v2151
      %v2184 = vadd.f32 %v2118, %v2152
      %v2185 = vadd.f32 %v2119, %v2153
      %v2186 = vld [vmem:[#allocation3 + $0x130] sm:$0xff]
      %v2187 = vld [vmem:[#allocation3 + $0x138] sm:$0xff]
      %v2188 = vmul.f32 %v2120, 0.24197145
      %v2189 = vmul.f32 %v2121, 0.24197145
      %v2190 = vmul.f32 %v2186, 0.24197145
      %v2191 = vmul.f32 %v2187, 0.24197145
      %v2192 = vadd.f32 %v2154, %v2060
      %v2193 = vadd.f32 %v2155, %v2061
      %v2194 = vadd.f32 %v2156, %v2062
      %v2195 = vadd.f32 %v2157, %v2063
      %v2196 = vadd.f32 %v2158, %v2064
      %v2197 = vadd.f32 %v2159, %v2065
      %v2198 = vadd.f32 %v2160, %v2066
      %v2199 = vadd.f32 %v2161, %v2067
      %v2200 = vadd.f32 %v2162, %v2068
      %v2201 = vadd.f32 %v2163, %v2069
      %v2202 = vadd.f32 %v2164, %v2070
      %v2203 = vadd.f32 %v2165, %v2071
      %v2204 = vadd.f32 %v2166, %v2072
      %v2205 = vadd.f32 %v2167, %v2073
      %v2206 = vadd.f32 %v2168, %v2074
      %v2207 = vadd.f32 %v2169, %v2075
      %v2208 = vadd.f32 %v2170, %v2076
      %v2209 = vadd.f32 %v2171, %v2077
      %v2210 = vadd.f32 %v2172, %v2078
      %v2211 = vadd.f32 %v2173, %v2079
      %v2212 = vadd.f32 %v2174, %v2080
      %v2213 = vadd.f32 %v2175, %v2081
      %v2214 = vadd.f32 %v2176, %v2082
      %v2215 = vadd.f32 %v2177, %v2083
      %v2216 = vadd.f32 %v2178, %v2084
      %v2217 = vadd.f32 %v2179, %v2085
      %v2218 = vadd.f32 %v2180, %v2086
      %v2219 = vadd.f32 %v2181, %v2087
      %v2220 = vadd.f32 %v2182, %v2188
      %v2221 = vadd.f32 %v2183, %v2189
      %v2222 = vadd.f32 %v2184, %v2190
      %v2223 = vadd.f32 %v2185, %v2191
      %v2224 = vld [vmem:[#allocation3 + $0x140] sm:$0xff]
      %v2225 = vld [vmem:[#allocation3 + $0x148] sm:$0xff]
      %v2226 = vmul.f32 %v2054, 0.053991128
      %v2227 = vmul.f32 %v2055, 0.053991128
      %v2228 = vmul.f32 %v2120, 0.053991128
      %v2229 = vmul.f32 %v2121, 0.053991128
      %v2230 = vmul.f32 %v2186, 0.053991128
      %v2231 = vmul.f32 %v2187, 0.053991128
      %v2232 = vmul.f32 %v2224, 0.053991128
      %v2233 = vmul.f32 %v2225, 0.053991128
      %v2234 = vadd.f32 %v2192, %v1998
      %v2235 = vadd.f32 %v2193, %v1999
      %v2236 = vadd.f32 %v2194, %v2000
      %v2237 = vadd.f32 %v2195, %v2001
      %v2238 = vadd.f32 %v2196, %v2002
      %v2239 = vadd.f32 %v2197, %v2003
      %v2240 = vadd.f32 %v2198, %v2004
      %v2241 = vadd.f32 %v2199, %v2005
      %v2242 = vadd.f32 %v2200, %v2006
      %v2243 = vadd.f32 %v2201, %v2007
      %v2244 = vadd.f32 %v2202, %v2008
      %v2245 = vadd.f32 %v2203, %v2009
      %v2246 = vadd.f32 %v2204, %v2010
      %v2247 = vadd.f32 %v2205, %v2011
      %v2248 = vadd.f32 %v2206, %v2012
      %v2249 = vadd.f32 %v2207, %v2013
      %v2250 = vadd.f32 %v2208, %v2014
      %v2251 = vadd.f32 %v2209, %v2015
      %v2252 = vadd.f32 %v2210, %v2016
      %v2253 = vadd.f32 %v2211, %v2017
      %v2254 = vadd.f32 %v2212, %v2018
      %v2255 = vadd.f32 %v2213, %v2019
      %v2256 = vadd.f32 %v2214, %v2020
      %v2257 = vadd.f32 %v2215, %v2021
      %v2258 = vadd.f32 %v2216, %v2226
      %v2259 = vadd.f32 %v2217, %v2227
      %v2260 = vadd.f32 %v2218, %v2228
      %v2261 = vadd.f32 %v2219, %v2229
      %v2262 = vadd.f32 %v2220, %v2230
      %v2263 = vadd.f32 %v2221, %v2231
      %v2264 = vadd.f32 %v2222, %v2232
      %v2265 = vadd.f32 %v2223, %v2233
      %v2266 = vld [vmem:[#allocation3 + $0x150] sm:$0xff]
      %v2267 = vld [vmem:[#allocation3 + $0x158] sm:$0xff]
      %v2268 = vmul.f32 %v1988, 0.004565692
      %v2269 = vmul.f32 %v1989, 0.004565692
      %v2270 = vmul.f32 %v2054, 0.004565692
      %v2271 = vmul.f32 %v2055, 0.004565692
      %v2272 = vmul.f32 %v2120, 0.004565692
      %v2273 = vmul.f32 %v2121, 0.004565692
      %v2274 = vmul.f32 %v2186, 0.004565692
      %v2275 = vmul.f32 %v2187, 0.004565692
      %v2276 = vmul.f32 %v2224, 0.004565692
      %v2277 = vmul.f32 %v2225, 0.004565692
      %v2278 = vmul.f32 %v2266, 0.004565692
      %v2279 = vmul.f32 %v2267, 0.004565692
      %v2280 = vadd.f32 %v2234, %v1968
      %v2281 = vadd.f32 %v2235, %v1969
      %v2282 = vadd.f32 %v2236, %v1970
      %v2283 = vadd.f32 %v2237, %v1971
      %v2284 = vadd.f32 %v2238, %v1972
      %v2285 = vadd.f32 %v2239, %v1973
      %v2286 = vadd.f32 %v2240, %v1974
      %v2287 = vadd.f32 %v2241, %v1975
      %v2288 = vadd.f32 %v2242, %v1976
      %v2289 = vadd.f32 %v2243, %v1977
      %v2290 = vadd.f32 %v2244, %v1978
      %v2291 = vadd.f32 %v2245, %v1979
      %v2292 = vadd.f32 %v2246, %v1980
      %v2293 = vadd.f32 %v2247, %v1981
      %v2294 = vadd.f32 %v2248, %v1982
      %v2295 = vadd.f32 %v2249, %v1983
      %v2296 = vadd.f32 %v2250, %v1984
      %v2297 = vadd.f32 %v2251, %v1985
      %v2298 = vadd.f32 %v2252, %v1986
      %v2299 = vadd.f32 %v2253, %v1987
      %v2300 = vadd.f32 %v2254, %v2268
      %v2301 = vadd.f32 %v2255, %v2269
      %v2302 = vadd.f32 %v2256, %v2270
      %v2303 = vadd.f32 %v2257, %v2271
      %v2304 = vadd.f32 %v2258, %v2272
      %v2305 = vadd.f32 %v2259, %v2273
      %v2306 = vadd.f32 %v2260, %v2274
      %v2307 = vadd.f32 %v2261, %v2275
      %v2308 = vadd.f32 %v2262, %v2276
      %v2309 = vadd.f32 %v2263, %v2277
      %v2310 = vadd.f32 %v2264, %v2278
      %v2311 = vadd.f32 %v2265, %v2279
      %2312 = vst.msk [vmem:[%s143] sm:$0xff] %vm178, %v2280
      %2313 = vst.msk [vmem:[%s143 + $0x8] sm:$0xff] %vm178, %v2281
      %2314 = vst.msk [vmem:[%s143 + $0x10] sm:$0xff] %vm178, %v2282
      %2315 = vst.msk [vmem:[%s143 + $0x18] sm:$0xff] %vm178, %v2283
      %2316 = vst.msk [vmem:[%s143 + $0x20] sm:$0xff] %vm178, %v2284
      %2317 = vst.msk [vmem:[%s143 + $0x28] sm:$0xff] %vm178, %v2285
      %2318 = vst.msk [vmem:[%s143 + $0x30] sm:$0xff] %vm178, %v2286
      %2319 = vst.msk [vmem:[%s143 + $0x38] sm:$0xff] %vm178, %v2287
      %2320 = vst.msk [vmem:[%s143 + $0x40] sm:$0xff] %vm178, %v2288
      %2321 = vst.msk [vmem:[%s143 + $0x48] sm:$0xff] %vm178, %v2289
      %2322 = vst.msk [vmem:[%s143 + $0x50] sm:$0xff] %vm178, %v2290
      %2323 = vst.msk [vmem:[%s143 + $0x58] sm:$0xff] %vm178, %v2291
      %2324 = vst.msk [vmem:[%s143 + $0x60] sm:$0xff] %vm178, %v2292
      %2325 = vst.msk [vmem:[%s143 + $0x68] sm:$0xff] %vm178, %v2293
      %2326 = vst.msk [vmem:[%s143 + $0x70] sm:$0xff] %vm178, %v2294
      %2327 = vst.msk [vmem:[%s143 + $0x78] sm:$0xff] %vm178, %v2295
      %2328 = vst.msk [vmem:[%s143 + $0x80] sm:$0xff] %vm178, %v2296
      %2329 = vst.msk [vmem:[%s143 + $0x88] sm:$0xff] %vm178, %v2297
      %2330 = vst.msk [vmem:[%s143 + $0x90] sm:$0xff] %vm178, %v2298
      %2331 = vst.msk [vmem:[%s143 + $0x98] sm:$0xff] %vm178, %v2299
      %2332 = vst.msk [vmem:[%s143 + $0xa0] sm:$0xff] %vm178, %v2300
      %2333 = vst.msk [vmem:[%s143 + $0xa8] sm:$0xff] %vm178, %v2301
      %2334 = vst.msk [vmem:[%s143 + $0xb0] sm:$0xff] %vm178, %v2302
      %2335 = vst.msk [vmem:[%s143 + $0xb8] sm:$0xff] %vm178, %v2303
      %2336 = vst.msk [vmem:[%s143 + $0xc0] sm:$0xff] %vm178, %v2304
      %2337 = vst.msk [vmem:[%s143 + $0xc8] sm:$0xff] %vm178, %v2305
      %2338 = vst.msk [vmem:[%s143 + $0xd0] sm:$0xff] %vm178, %v2306
      %2339 = vst.msk [vmem:[%s143 + $0xd8] sm:$0xff] %vm178, %v2307
      %2340 = vst.msk [vmem:[%s143 + $0xe0] sm:$0xff] %vm178, %v2308
      %2341 = vst.msk [vmem:[%s143 + $0xe8] sm:$0xff] %vm178, %v2309
      %2342 = vst.msk [vmem:[%s143 + $0xf0] sm:$0xff] %vm178, %v2310
      %2343 = vst.msk [vmem:[%s143 + $0xf8] sm:$0xff] %vm178, %v2311
      %p2344 = scmp.lt.s32.totalorder %s13, 1
      %s2345 = scalar_select %p2344, %s13, 1
      %s2346 = smul.addr %s2345, 32
      %s2347 = smul.addr %s2346, 8
      %s2348 = scalar_lea.vmem %s2, %s2347
      // Predicated region
      $region29: #{tpu_custom_call.1} parent=27 // pred_check
        %p2349 = pneg %p78
      $region30: #{tpu_custom_call.1} parent=27 // pred_check_branch
        %2351 = sbr.rel (%p2349) target = $region32
      $region31: #{tpu_custom_call.1} parent=27 // pred_region
        _
      $region32: #{tpu_custom_call.1} parent=27 // pred_fallthru
        _
    $region28: #{tpu_custom_call.1} parent=5 // pred_fallthru
      _
    %p2352 = scmp.le.s32.totalorder 2, %s8
    // Predicated region
    $region33: #{tpu_custom_call.1} parent=5 // pred_check
      %p2353 = pneg %p2352
    $region34: #{tpu_custom_call.1} parent=5 // pred_check_branch
      %2355 = sbr.rel (%p2353) target = $region36
    $region35: #{tpu_custom_call.1} parent=5 // pred_region
      %s2356 = ssub.s32 %s8, 2
      // Predicated region
      $region37: #{tpu_custom_call.1} parent=35 // pred_check
        %p2357 = pneg %p84
      $region38: #{tpu_custom_call.1} parent=35 // pred_check_branch
        %2359 = sbr.rel (%p2357) target = $region40
      $region39: #{tpu_custom_call.1} parent=35 // pred_region
        %p2360 = scmp.lt.s32.totalorder %s14, 1
        %s2361 = scalar_select %p2360, %s14, 1
        %s2362 = smul.addr %s2361, 32
        %s2363 = smul.addr %s2362, 8
        %s2364 = scalar_lea.vmem %s2, %s2363
      $region40: #{tpu_custom_call.1} parent=35 // pred_fallthru
        _
    $region36: #{tpu_custom_call.1} parent=5 // pred_fallthru
      _
  $region6: #{tpu_custom_call.1} parent=0 // loop_footer
    %s12 = sadd.s32 1, %s8
  $region7: #{tpu_custom_call.1} parent=0 // loop_footer_branch
    %7 = sbr.rel target = $region3
  $region8: #{tpu_custom_call.1} parent=0 // loop_exit
    _

</llo_original>
